<compile_context>
chip_gen: v7x
topology: tpu7x:2x2x1
jax: 0.10.0
libtpu: 0.0.40
codegen_flags: <defaults>
</compile_context>

<pallas_src>
import jax
import jax.numpy as jnp
from jax.experimental import pallas as pl
from jax.experimental.pallas import tpu as pltpu


def _round_up(x: int, m: int) -> int:
    return ((x + m - 1) // m) * m


def _decoder_mesh_kernel(x_ref, w1_ref, b1_ref, a1_ref,
                         w2_ref, b2_ref, a2_ref,
                         w3_ref, b3_ref, out_ref, h2_ref):
    """Grid = (batch_tiles, out_dim_tiles).

    Layers 1-2 (and the bf16 cast of x) run once per batch tile (j == 0);
    the bf16 h2 activation lives in VMEM scratch and is reused by every
    out_dim tile j, which only does its layer-3 matmul slice + tanh."""
    j = pl.program_id(1)

    @pl.when(j == 0)
    def _():
        x = x_ref[...].astype(jnp.bfloat16)            # cast on VPU, not in XLA
        a1 = a1_ref[0]                                 # PReLU slopes (SMEM scalars)
        a2 = a2_ref[0]

        h1 = jnp.dot(x, w1_ref[...],
                     preferred_element_type=jnp.float32) + b1_ref[...]
        h1 = jnp.where(h1 > 0, h1, a1 * h1)            # PReLU

        h2 = jnp.dot(h1.astype(jnp.bfloat16), w2_ref[...],
                     preferred_element_type=jnp.float32) + b2_ref[...]
        h2 = jnp.where(h2 > 0, h2, a2 * h2)            # PReLU
        h2_ref[...] = h2.astype(jnp.bfloat16)

    h3 = jnp.dot(h2_ref[...], w3_ref[...],
                 preferred_element_type=jnp.float32) + b3_ref[...]
    out_ref[...] = jnp.tanh(h3).astype(out_ref.dtype)


def decoder_mesh_forward(features, params, n_points, *,
                         tile_b=256, tile_n=512, out_dtype=jnp.float32):
    """features: [B, features_d] (f32 or bf16). Returns [B, n_points, 3]."""
    w1, b1, a1, w2, b2, a2, w3, b3 = params
    if features.ndim == 1:                 # module accepts a single feature vector
        features = features[None, :]
    B, features_d = features.shape
    h1_dim = w1.shape[1]
    h2_dim = w2.shape[1]
    out_dim = w3.shape[1]                  # 3 * n_points
    assert out_dim == 3 * n_points

    # --- tile sizing (block_shape must obey the (8, 128) rule) ---------------
    tile_b = max(8, min(_round_up(tile_b, 8), _round_up(B, 8)))
    tile_n = max(128, min(_round_up(tile_n, 128), _round_up(out_dim, 128)))
    out_pad = _round_up(out_dim, tile_n)   # lane-dense, unmasked output stores
    n_tiles_b = pl.cdiv(B, tile_b)
    n_tiles_n = out_pad // tile_n

    # Pad w3 / b3 columns with zeros (padded outputs = tanh(0) = 0, sliced off).
    if out_pad != out_dim:
        w3 = jnp.pad(w3, ((0, 0), (0, out_pad - out_dim)))
        b3 = jnp.pad(b3, ((0, 0), (0, out_pad - out_dim)))

    x_bytes = jnp.dtype(features.dtype).itemsize
    o_bytes = jnp.dtype(out_dtype).itemsize

    # --- advisory cost estimate ----------------------------------------------
    flops = 2 * B * (features_d * h1_dim + h1_dim * h2_dim + h2_dim * out_pad)
    bytes_accessed = (
        B * features_d * x_bytes
        + (features_d * h1_dim + h1_dim * h2_dim) * 2        # w1, w2 (bf16)
        + n_tiles_b * h2_dim * out_pad * 2                    # w3 streamed per batch tile
        + (h1_dim + h2_dim + out_pad) * 4                     # biases (f32)
        + B * out_pad * o_bytes)
    cost = pl.CostEstimate(flops=flops, transcendentals=B * out_pad,
                           bytes_accessed=bytes_accessed)

    def call_once(single_buffer_weights):
        # Grid-invariant weights/biases: VMEM-resident across all grid steps;
        # single-buffered when supported (double-buffering them wastes VMEM).
        if single_buffer_weights:
            def resident(shape):
                return pl.BlockSpec(shape, lambda i, j: (0, 0),
                                    pipeline_mode=pl.Buffered(1))
            wbuf = 1
        else:
            def resident(shape):
                return pl.BlockSpec(shape, lambda i, j: (0, 0))
            wbuf = 2

        smem_spec = pl.BlockSpec(memory_space=pltpu.MemorySpace.SMEM)

        # Explicit VMEM budget; default scoped limit (16/32 MiB) would reject
        # the production 512 -> 1024 -> 2048 -> 3*n_points sizes.
        vmem_bytes = (
            wbuf * ((features_d * h1_dim + h1_dim * h2_dim) * 2
                    + (h1_dim + h2_dim) * 4)
            + 2 * (h2_dim * tile_n * 2 + tile_n * 4)      # streamed w3/b3 slices
            + 2 * tile_b * features_d * x_bytes           # x tile (double-buffered)
            + 2 * tile_b * tile_n * o_bytes               # out tile
            + tile_b * h2_dim * 2)                        # h2 scratch (bf16)
        vmem_limit = max(32 << 20,
                         min(int(vmem_bytes * 1.5) + (4 << 20), 64 << 20))

        fn = pl.pallas_call(
            _decoder_mesh_kernel,
            out_shape=jax.ShapeDtypeStruct((B, out_pad), out_dtype),
            grid=(n_tiles_b, n_tiles_n),
            in_specs=[
                pl.BlockSpec((tile_b, features_d), lambda i, j: (i, 0)),  # x
                resident((features_d, h1_dim)),                           # w1
                resident((1, h1_dim)),                                    # b1
                smem_spec,                                                # alpha1
                resident((h1_dim, h2_dim)),                               # w2
                resident((1, h2_dim)),                                    # b2
                smem_spec,                                                # alpha2
                pl.BlockSpec((h2_dim, tile_n), lambda i, j: (0, j)),      # w3 slice
                pl.BlockSpec((1, tile_n), lambda i, j: (0, j)),           # b3 slice
            ],
            out_specs=pl.BlockSpec((tile_b, tile_n), lambda i, j: (i, j)),
            scratch_shapes=[pltpu.VMEM((tile_b, h2_dim), jnp.bfloat16)],  # h2
            compiler_params=pltpu.CompilerParams(
                dimension_semantics=("parallel", "arbitrary"),
                vmem_limit_bytes=vmem_limit),
            cost_estimate=cost,
        )
        return fn(features, w1, b1, a1, w2, b2, a2, w3, b3)

    try:
        out = jax.block_until_ready(call_once(True))
    except Exception:
        # Fallback for jax versions that reject Buffered(1) on pallas_call specs.
        out = jax.block_until_ready(call_once(False))

    out = out[:, :out_dim]                 # drop lane padding (wrapper glue)
    return out.reshape((-1, n_points, 3))


def init_params(key, features_d, h1, h2, n_points):
    """Synthetic nn.Linear-style init (uniform +-1/sqrt(fan_in)), PReLU alpha=0.25.
    Weights stored [in, out] in bf16 (MXU input dtype); biases f32; alphas (1,) f32."""
    k = jax.random.split(key, 6)

    def lin(kw, kb, fan_in, fan_out):
        bound = 1.0 / jnp.sqrt(jnp.float32(fan_in))
        w = jax.random.uniform(kw, (fan_in, fan_out), jnp.float32, -bound, bound)
        b = jax.random.uniform(kb, (1, fan_out), jnp.float32, -bound, bound)
        return w.astype(jnp.bfloat16), b

    w1, b1 = lin(k[0], k[1], features_d, h1)
    w2, b2 = lin(k[2], k[3], h1, h2)
    w3, b3 = lin(k[4], k[5], h2, 3 * n_points)
    a1 = jnp.full((1,), 0.25, jnp.float32)
    a2 = jnp.full((1,), 0.25, jnp.float32)
    return (w1, b1, a1, w2, b2, a2, w3, b3)


def reference_forward(features, params, n_points):
    """Pure-JAX reference with the same bf16-input / f32-accumulate matmuls."""
    w1, b1, a1, w2, b2, a2, w3, b3 = params
    h = jnp.dot(features.astype(jnp.bfloat16), w1,
                preferred_element_type=jnp.float32) + b1
    h = jnp.where(h > 0, h, a1[0] * h)
    h = jnp.dot(h.astype(jnp.bfloat16), w2,
                preferred_element_type=jnp.float32) + b2
    h = jnp.where(h > 0, h, a2[0] * h)
    h = jnp.tanh(jnp.dot(h.astype(jnp.bfloat16), w3,
                         preferred_element_type=jnp.float32) + b3)
    return h.reshape((-1, n_points, 3))


if __name__ == "__main__":
    # Small, tile-aligned stand-ins for the module's (512 -> 1024 -> 2048 ->
    # 3*n_points) MLP: features_d=128, hidden 128/256, n_points=128 (out dim
    # 384), batch=256.  tile_b=128 / tile_n=128 so BOTH grid axes
    # (2 batch tiles x 3 out_dim tiles) and the h2-scratch reuse are exercised.
    B, FEATURES_D, H1, H2, N_POINTS = 256, 128, 128, 256, 128

    key = jax.random.PRNGKey(0)
    k_feat, k_params = jax.random.split(key)

    features = jax.random.normal(k_feat, (B, FEATURES_D), jnp.float32)
    params = init_params(k_params, FEATURES_D, H1, H2, N_POINTS)

    out = decoder_mesh_forward(features, params, N_POINTS, tile_b=128, tile_n=128)
    out = jax.block_until_ready(out)

    ref = reference_forward(features, params, N_POINTS)
    assert out.shape == (B, N_POINTS, 3), out.shape
    assert jnp.allclose(out, ref, atol=1e-3, rtol=1e-3), "mismatch vs reference"

    print("KERNEL_OK")
</pallas_src>

<mosaic_0001>
module attributes {stable_mosaic.version = 11 : i64} {
  func.func @_decoder_mesh_kernel(%arg0: i32, %arg1: i32, %arg2: memref<128x128xf32, #tpu.memory_space<vmem>>, %arg3: memref<128x128xbf16, #tpu.memory_space<vmem>>, %arg4: memref<1x128xf32, #tpu.memory_space<vmem>>, %arg5: memref<1xf32, #tpu.memory_space<smem>>, %arg6: memref<128x256xbf16, #tpu.memory_space<vmem>>, %arg7: memref<1x256xf32, #tpu.memory_space<vmem>>, %arg8: memref<1xf32, #tpu.memory_space<smem>>, %arg9: memref<256x128xbf16, #tpu.memory_space<vmem>>, %arg10: memref<1x128xf32, #tpu.memory_space<vmem>>, %arg11: memref<128x128xf32, #tpu.memory_space<vmem>>, %arg12: memref<128x256xbf16, #tpu.memory_space<vmem>>) attributes {dimension_semantics = [#tpu.dimension_semantics<parallel>, #tpu.dimension_semantics<arbitrary>], iteration_bounds = array<i64: 2, 3>, scalar_prefetch = 0 : i64, scratch_operands = 1 : i64, tpu.core_type = #tpu.core_type<tc>, window_params = [{transform_indices = @transform_0, window_bounds = array<i64: 128, 128>}, {pipeline_mode = #tpu.pipeline_mode<synchronous>, transform_indices = @transform_1, window_bounds = array<i64: 128, 128>}, {pipeline_mode = #tpu.pipeline_mode<synchronous>, transform_indices = @transform_2, window_bounds = array<i64: 1, 128>}, {transform_indices = @transform_3, window_bounds = array<i64: 1>}, {pipeline_mode = #tpu.pipeline_mode<synchronous>, transform_indices = @transform_4, window_bounds = array<i64: 128, 256>}, {pipeline_mode = #tpu.pipeline_mode<synchronous>, transform_indices = @transform_5, window_bounds = array<i64: 1, 256>}, {transform_indices = @transform_6, window_bounds = array<i64: 1>}, {transform_indices = @transform_7, window_bounds = array<i64: 256, 128>}, {transform_indices = @transform_8, window_bounds = array<i64: 1, 128>}, {transform_indices = @transform_9, window_bounds = array<i64: 128, 128>}]} {
    %c0_i32 = arith.constant 0 : i32
    %0 = arith.cmpi eq, %arg1, %c0_i32 : i32
    %1 = arith.extui %0 : i1 to i32
    %c0_i32_0 = arith.constant 0 : i32
    %2 = arith.cmpi ne, %1, %c0_i32_0 : i32
    scf.if %2 {
      %c0_8 = arith.constant 0 : index
      %c0_9 = arith.constant 0 : index
      %11 = vector.load %arg2[%c0_8, %c0_9] : memref<128x128xf32, #tpu.memory_space<vmem>>, vector<128x128xf32>
      %12 = arith.truncf %11 : vector<128x128xf32> to vector<128x128xbf16>
      %c0_10 = arith.constant 0 : index
      %13 = memref.load %arg5[%c0_10] : memref<1xf32, #tpu.memory_space<smem>>
      %c0_11 = arith.constant 0 : index
      %14 = memref.load %arg8[%c0_11] : memref<1xf32, #tpu.memory_space<smem>>
      %c0_12 = arith.constant 0 : index
      %c0_13 = arith.constant 0 : index
      %15 = vector.load %arg3[%c0_12, %c0_13] : memref<128x128xbf16, #tpu.memory_space<vmem>>, vector<128x128xbf16>
      %cst_14 = arith.constant dense<0.000000e+00> : vector<128x128xf32>
      %16 = tpu.matmul %12, %15, %cst_14 {dimension_numbers = #tpu.dot_dimension_numbers<[1], [0], [0], [1], [0, 0, 1, 1], [], []>} : vector<128x128xbf16>, vector<128x128xbf16>, vector<128x128xf32> -> vector<128x128xf32>
      %c0_15 = arith.constant 0 : index
      %c0_16 = arith.constant 0 : index
      %17 = vector.load %arg4[%c0_15, %c0_16] : memref<1x128xf32, #tpu.memory_space<vmem>>, vector<1x128xf32>
      %18 = vector.broadcast %17 : vector<1x128xf32> to vector<128x128xf32>
      %19 = arith.addf %16, %18 : vector<128x128xf32>
      %cst_17 = arith.constant 0.000000e+00 : f32
      %20 = vector.broadcast %cst_17 : f32 to vector<128x128xf32>
      %21 = arith.cmpf ogt, %19, %20 : vector<128x128xf32>
      %22 = vector.broadcast %13 : f32 to vector<128x128xf32>
      %23 = arith.mulf %22, %19 : vector<128x128xf32>
      %24 = arith.select %21, %19, %23 : vector<128x128xi1>, vector<128x128xf32>
      %25 = arith.truncf %24 : vector<128x128xf32> to vector<128x128xbf16>
      %c0_18 = arith.constant 0 : index
      %c0_19 = arith.constant 0 : index
      %26 = vector.load %arg6[%c0_18, %c0_19] : memref<128x256xbf16, #tpu.memory_space<vmem>>, vector<128x256xbf16>
      %cst_20 = arith.constant dense<0.000000e+00> : vector<128x256xf32>
      %27 = tpu.matmul %25, %26, %cst_20 {dimension_numbers = #tpu.dot_dimension_numbers<[1], [0], [0], [1], [0, 0, 1, 1], [], []>} : vector<128x128xbf16>, vector<128x256xbf16>, vector<128x256xf32> -> vector<128x256xf32>
      %c0_21 = arith.constant 0 : index
      %c0_22 = arith.constant 0 : index
      %28 = vector.load %arg7[%c0_21, %c0_22] : memref<1x256xf32, #tpu.memory_space<vmem>>, vector<1x256xf32>
      %29 = vector.broadcast %28 : vector<1x256xf32> to vector<128x256xf32>
      %30 = arith.addf %27, %29 : vector<128x256xf32>
      %cst_23 = arith.constant 0.000000e+00 : f32
      %31 = vector.broadcast %cst_23 : f32 to vector<128x256xf32>
      %32 = arith.cmpf ogt, %30, %31 : vector<128x256xf32>
      %33 = vector.broadcast %14 : f32 to vector<128x256xf32>
      %34 = arith.mulf %33, %30 : vector<128x256xf32>
      %35 = arith.select %32, %30, %34 : vector<128x256xi1>, vector<128x256xf32>
      %36 = arith.truncf %35 : vector<128x256xf32> to vector<128x256xbf16>
      %c0_24 = arith.constant 0 : index
      %c0_25 = arith.constant 0 : index
      %37 = vector.load %arg12[%c0_24, %c0_25] : memref<128x256xbf16, #tpu.memory_space<vmem>>, vector<128x256xbf16>
      tpu.vector_store %arg12[%c0_24, %c0_25], %36 {strides = array<i32>} : memref<128x256xbf16, #tpu.memory_space<vmem>>, vector<128x256xbf16>,
    } else {
    }
    %c0 = arith.constant 0 : index
    %c0_1 = arith.constant 0 : index
    %3 = vector.load %arg12[%c0, %c0_1] : memref<128x256xbf16, #tpu.memory_space<vmem>>, vector<128x256xbf16>
    %c0_2 = arith.constant 0 : index
    %c0_3 = arith.constant 0 : index
    %4 = vector.load %arg9[%c0_2, %c0_3] : memref<256x128xbf16, #tpu.memory_space<vmem>>, vector<256x128xbf16>
    %cst = arith.constant dense<0.000000e+00> : vector<128x128xf32>
    %5 = tpu.matmul %3, %4, %cst {dimension_numbers = #tpu.dot_dimension_numbers<[1], [0], [0], [1], [0, 0, 1, 1], [], []>} : vector<128x256xbf16>, vector<256x128xbf16>, vector<128x128xf32> -> vector<128x128xf32>
    %c0_4 = arith.constant 0 : index
    %c0_5 = arith.constant 0 : index
    %6 = vector.load %arg10[%c0_4, %c0_5] : memref<1x128xf32, #tpu.memory_space<vmem>>, vector<1x128xf32>
    %7 = vector.broadcast %6 : vector<1x128xf32> to vector<128x128xf32>
    %8 = arith.addf %5, %7 : vector<128x128xf32>
    %9 = math.tanh %8 : vector<128x128xf32>
    %c0_6 = arith.constant 0 : index
    %c0_7 = arith.constant 0 : index
    %10 = vector.load %arg11[%c0_6, %c0_7] : memref<128x128xf32, #tpu.memory_space<vmem>>, vector<128x128xf32>
    tpu.vector_store %arg11[%c0_6, %c0_7], %9 {strides = array<i32>} : memref<128x128xf32, #tpu.memory_space<vmem>>, vector<128x128xf32>,
    return
  }
  func.func @transform_0(%arg0: i32, %arg1: i32) -> (i32, i32) {
    %c0_i32 = arith.constant 0 : i32
    %c0_i32_0 = arith.constant 0 : i32
    return %arg0, %c0_i32 : i32, i32
  }
  func.func @transform_1(%arg0: i32, %arg1: i32) -> (i32, i32) {
    %c0_i32 = arith.constant 0 : i32
    %c0_i32_0 = arith.constant 0 : i32
    %c0_i32_1 = arith.constant 0 : i32
    return %c0_i32, %c0_i32_0 : i32, i32
  }
  func.func @transform_2(%arg0: i32, %arg1: i32) -> (i32, i32) {
    %c0_i32 = arith.constant 0 : i32
    %c0_i32_0 = arith.constant 0 : i32
    %c0_i32_1 = arith.constant 0 : i32
    return %c0_i32, %c0_i32_0 : i32, i32
  }
  func.func @transform_3(%arg0: i32, %arg1: i32) -> i32 {
    %c0_i32 = arith.constant 0 : i32
    %c0_i32_0 = arith.constant 0 : i32
    return %c0_i32 : i32
  }
  func.func @transform_4(%arg0: i32, %arg1: i32) -> (i32, i32) {
    %c0_i32 = arith.constant 0 : i32
    %c0_i32_0 = arith.constant 0 : i32
    %c0_i32_1 = arith.constant 0 : i32
    return %c0_i32, %c0_i32_0 : i32, i32
  }
  func.func @transform_5(%arg0: i32, %arg1: i32) -> (i32, i32) {
    %c0_i32 = arith.constant 0 : i32
    %c0_i32_0 = arith.constant 0 : i32
    %c0_i32_1 = arith.constant 0 : i32
    return %c0_i32, %c0_i32_0 : i32, i32
  }
  func.func @transform_6(%arg0: i32, %arg1: i32) -> i32 {
    %c0_i32 = arith.constant 0 : i32
    %c0_i32_0 = arith.constant 0 : i32
    return %c0_i32 : i32
  }
  func.func @transform_7(%arg0: i32, %arg1: i32) -> (i32, i32) {
    %c0_i32 = arith.constant 0 : i32
    %c0_i32_0 = arith.constant 0 : i32
    return %c0_i32, %arg1 : i32, i32
  }
  func.func @transform_8(%arg0: i32, %arg1: i32) -> (i32, i32) {
    %c0_i32 = arith.constant 0 : i32
    %c0_i32_0 = arith.constant 0 : i32
    return %c0_i32, %arg1 : i32, i32
  }
  func.func @transform_9(%arg0: i32, %arg1: i32) -> (i32, i32) {
    %c0_i32 = arith.constant 0 : i32
    return %arg0, %arg1 : i32, i32
  }
}

module attributes {stable_mosaic.version = 11 : i64} {
  func.func @_decoder_mesh_kernel(%arg0: i32, %arg1: i32, %arg2: memref<128x128xf32, #tpu.memory_space<vmem>>, %arg3: memref<128x128xbf16, #tpu.memory_space<vmem>>, %arg4: memref<1x128xf32, #tpu.memory_space<vmem>>, %arg5: memref<1xf32, #tpu.memory_space<smem>>, %arg6: memref<128x256xbf16, #tpu.memory_space<vmem>>, %arg7: memref<1x256xf32, #tpu.memory_space<vmem>>, %arg8: memref<1xf32, #tpu.memory_space<smem>>, %arg9: memref<256x128xbf16, #tpu.memory_space<vmem>>, %arg10: memref<1x128xf32, #tpu.memory_space<vmem>>, %arg11: memref<128x128xf32, #tpu.memory_space<vmem>>, %arg12: memref<128x256xbf16, #tpu.memory_space<vmem>>) attributes {dimension_semantics = [#tpu.dimension_semantics<parallel>, #tpu.dimension_semantics<arbitrary>], iteration_bounds = array<i64: 2, 3>, scalar_prefetch = 0 : i64, scratch_operands = 1 : i64, tpu.core_type = #tpu.core_type<tc>, window_params = [{transform_indices = @transform_0, window_bounds = array<i64: 128, 128>}, {pipeline_mode = #tpu.pipeline_mode<synchronous>, transform_indices = @transform_1, window_bounds = array<i64: 128, 128>}, {pipeline_mode = #tpu.pipeline_mode<synchronous>, transform_indices = @transform_2, window_bounds = array<i64: 1, 128>}, {transform_indices = @transform_3, window_bounds = array<i64: 1>}, {pipeline_mode = #tpu.pipeline_mode<synchronous>, transform_indices = @transform_4, window_bounds = array<i64: 128, 256>}, {pipeline_mode = #tpu.pipeline_mode<synchronous>, transform_indices = @transform_5, window_bounds = array<i64: 1, 256>}, {transform_indices = @transform_6, window_bounds = array<i64: 1>}, {transform_indices = @transform_7, window_bounds = array<i64: 256, 128>}, {transform_indices = @transform_8, window_bounds = array<i64: 1, 128>}, {transform_indices = @transform_9, window_bounds = array<i64: 128, 128>}]} {
    %c0_i32 = arith.constant 0 : i32
    %0 = arith.cmpi eq, %arg1, %c0_i32 : i32
    %1 = arith.extui %0 : i1 to i32
    %c0_i32_0 = arith.constant 0 : i32
    %2 = arith.cmpi ne, %1, %c0_i32_0 : i32
    scf.if %2 {
      %c0_8 = arith.constant 0 : index
      %c0_9 = arith.constant 0 : index
      %11 = vector.load %arg2[%c0_8, %c0_9] : memref<128x128xf32, #tpu.memory_space<vmem>>, vector<128x128xf32>
      %12 = arith.truncf %11 : vector<128x128xf32> to vector<128x128xbf16>
      %c0_10 = arith.constant 0 : index
      %13 = memref.load %arg5[%c0_10] : memref<1xf32, #tpu.memory_space<smem>>
      %c0_11 = arith.constant 0 : index
      %14 = memref.load %arg8[%c0_11] : memref<1xf32, #tpu.memory_space<smem>>
      %c0_12 = arith.constant 0 : index
      %c0_13 = arith.constant 0 : index
      %15 = vector.load %arg3[%c0_12, %c0_13] : memref<128x128xbf16, #tpu.memory_space<vmem>>, vector<128x128xbf16>
      %cst_14 = arith.constant dense<0.000000e+00> : vector<128x128xf32>
      %16 = tpu.matmul %12, %15, %cst_14 {dimension_numbers = #tpu.dot_dimension_numbers<[1], [0], [0], [1], [0, 0, 1, 1], [], []>} : vector<128x128xbf16>, vector<128x128xbf16>, vector<128x128xf32> -> vector<128x128xf32>
      %c0_15 = arith.constant 0 : index
      %c0_16 = arith.constant 0 : index
      %17 = vector.load %arg4[%c0_15, %c0_16] : memref<1x128xf32, #tpu.memory_space<vmem>>, vector<1x128xf32>
      %18 = vector.broadcast %17 : vector<1x128xf32> to vector<128x128xf32>
      %19 = arith.addf %16, %18 : vector<128x128xf32>
      %cst_17 = arith.constant 0.000000e+00 : f32
      %20 = vector.broadcast %cst_17 : f32 to vector<128x128xf32>
      %21 = arith.cmpf ogt, %19, %20 : vector<128x128xf32>
      %22 = vector.broadcast %13 : f32 to vector<128x128xf32>
      %23 = arith.mulf %22, %19 : vector<128x128xf32>
      %24 = arith.select %21, %19, %23 : vector<128x128xi1>, vector<128x128xf32>
      %25 = arith.truncf %24 : vector<128x128xf32> to vector<128x128xbf16>
      %c0_18 = arith.constant 0 : index
      %c0_19 = arith.constant 0 : index
      %26 = vector.load %arg6[%c0_18, %c0_19] : memref<128x256xbf16, #tpu.memory_space<vmem>>, vector<128x256xbf16>
      %cst_20 = arith.constant dense<0.000000e+00> : vector<128x256xf32>
      %27 = tpu.matmul %25, %26, %cst_20 {dimension_numbers = #tpu.dot_dimension_numbers<[1], [0], [0], [1], [0, 0, 1, 1], [], []>} : vector<128x128xbf16>, vector<128x256xbf16>, vector<128x256xf32> -> vector<128x256xf32>
      %c0_21 = arith.constant 0 : index
      %c0_22 = arith.constant 0 : index
      %28 = vector.load %arg7[%c0_21, %c0_22] : memref<1x256xf32, #tpu.memory_space<vmem>>, vector<1x256xf32>
      %29 = vector.broadcast %28 : vector<1x256xf32> to vector<128x256xf32>
      %30 = arith.addf %27, %29 : vector<128x256xf32>
      %cst_23 = arith.constant 0.000000e+00 : f32
      %31 = vector.broadcast %cst_23 : f32 to vector<128x256xf32>
      %32 = arith.cmpf ogt, %30, %31 : vector<128x256xf32>
      %33 = vector.broadcast %14 : f32 to vector<128x256xf32>
      %34 = arith.mulf %33, %30 : vector<128x256xf32>
      %35 = arith.select %32, %30, %34 : vector<128x256xi1>, vector<128x256xf32>
      %36 = arith.truncf %35 : vector<128x256xf32> to vector<128x256xbf16>
      %c0_24 = arith.constant 0 : index
      %c0_25 = arith.constant 0 : index
      %37 = vector.load %arg12[%c0_24, %c0_25] : memref<128x256xbf16, #tpu.memory_space<vmem>>, vector<128x256xbf16>
      tpu.vector_store %arg12[%c0_24, %c0_25], %36 {strides = array<i32>} : memref<128x256xbf16, #tpu.memory_space<vmem>>, vector<128x256xbf16>,
    } else {
    }
    %c0 = arith.constant 0 : index
    %c0_1 = arith.constant 0 : index
    %3 = vector.load %arg12[%c0, %c0_1] : memref<128x256xbf16, #tpu.memory_space<vmem>>, vector<128x256xbf16>
    %c0_2 = arith.constant 0 : index
    %c0_3 = arith.constant 0 : index
    %4 = vector.load %arg9[%c0_2, %c0_3] : memref<256x128xbf16, #tpu.memory_space<vmem>>, vector<256x128xbf16>
    %cst = arith.constant dense<0.000000e+00> : vector<128x128xf32>
    %5 = tpu.matmul %3, %4, %cst {dimension_numbers = #tpu.dot_dimension_numbers<[1], [0], [0], [1], [0, 0, 1, 1], [], []>} : vector<128x256xbf16>, vector<256x128xbf16>, vector<128x128xf32> -> vector<128x128xf32>
    %c0_4 = arith.constant 0 : index
    %c0_5 = arith.constant 0 : index
    %6 = vector.load %arg10[%c0_4, %c0_5] : memref<1x128xf32, #tpu.memory_space<vmem>>, vector<1x128xf32>
    %7 = vector.broadcast %6 : vector<1x128xf32> to vector<128x128xf32>
    %8 = arith.addf %5, %7 : vector<128x128xf32>
    %9 = math.tanh %8 : vector<128x128xf32>
    %c0_6 = arith.constant 0 : index
    %c0_7 = arith.constant 0 : index
    %10 = vector.load %arg11[%c0_6, %c0_7] : memref<128x128xf32, #tpu.memory_space<vmem>>, vector<128x128xf32>
    tpu.vector_store %arg11[%c0_6, %c0_7], %9 {strides = array<i32>} : memref<128x128xf32, #tpu.memory_space<vmem>>, vector<128x128xf32>,
    return
  }
  func.func @transform_0(%arg0: i32, %arg1: i32) -> (i32, i32) {
    %c0_i32 = arith.constant 0 : i32
    %c0_i32_0 = arith.constant 0 : i32
    return %arg0, %c0_i32 : i32, i32
  }
  func.func @transform_1(%arg0: i32, %arg1: i32) -> (i32, i32) {
    %c0_i32 = arith.constant 0 : i32
    %c0_i32_0 = arith.constant 0 : i32
    %c0_i32_1 = arith.constant 0 : i32
    return %c0_i32, %c0_i32_0 : i32, i32
  }
  func.func @transform_2(%arg0: i32, %arg1: i32) -> (i32, i32) {
    %c0_i32 = arith.constant 0 : i32
    %c0_i32_0 = arith.constant 0 : i32
    %c0_i32_1 = arith.constant 0 : i32
    return %c0_i32, %c0_i32_0 : i32, i32
  }
  func.func @transform_3(%arg0: i32, %arg1: i32) -> i32 {
    %c0_i32 = arith.constant 0 : i32
    %c0_i32_0 = arith.constant 0 : i32
    return %c0_i32 : i32
  }
  func.func @transform_4(%arg0: i32, %arg1: i32) -> (i32, i32) {
    %c0_i32 = arith.constant 0 : i32
    %c0_i32_0 = arith.constant 0 : i32
    %c0_i32_1 = arith.constant 0 : i32
    return %c0_i32, %c0_i32_0 : i32, i32
  }
  func.func @transform_5(%arg0: i32, %arg1: i32) -> (i32, i32) {
    %c0_i32 = arith.constant 0 : i32
    %c0_i32_0 = arith.constant 0 : i32
    %c0_i32_1 = arith.constant 0 : i32
    return %c0_i32, %c0_i32_0 : i32, i32
  }
  func.func @transform_6(%arg0: i32, %arg1: i32) -> i32 {
    %c0_i32 = arith.constant 0 : i32
    %c0_i32_0 = arith.constant 0 : i32
    return %c0_i32 : i32
  }
  func.func @transform_7(%arg0: i32, %arg1: i32) -> (i32, i32) {
    %c0_i32 = arith.constant 0 : i32
    %c0_i32_0 = arith.constant 0 : i32
    return %c0_i32, %arg1 : i32, i32
  }
  func.func @transform_8(%arg0: i32, %arg1: i32) -> (i32, i32) {
    %c0_i32 = arith.constant 0 : i32
    %c0_i32_0 = arith.constant 0 : i32
    return %c0_i32, %arg1 : i32, i32
  }
  func.func @transform_9(%arg0: i32, %arg1: i32) -> (i32, i32) {
    %c0_i32 = arith.constant 0 : i32
    return %arg0, %arg1 : i32, i32
  }
}

</mosaic_0001>

<llo_original>
// kernel: tpu_custom_call.1
$region0: #{tpu_custom_call.1}
  #allocation0 [shape = 'u32[]', space=smem, size = 0x4, offset = 0x4, fixed_abs, tag = 'smem constant byte address 0x4 - core index']
  #allocation1 [shape = 'u32[144,128]{1,0:T(1,128)}', space=vmem, size = 0x12000, scoped, tag = 'internal scratch']
  #allocation2 [shape = 'bf16[128,256]{1,0:T(16,128)(2,1)}', space=vmem, size = 0x10000, scoped, tag = 'scratch operand']
  #allocation3 [shape = 'f32[1]{0:T(128)S(6)}', space=smem, size = 0x200, scoped, tag = 'scoped memory for tpu_custom_call.1']
  #allocation4 [shape = 'f32[1]{0:T(128)S(6)}', space=smem, size = 0x200, scoped, tag = 'scoped memory for tpu_custom_call.1']
  %s0 = inlined_call_operand.hbm [shape: f32[256,128], index: 0, kind: input, shape index: {}]
  %s1 = inlined_call_operand.hbm [shape: bf16[128,128], index: 1, kind: input, shape index: {}]
  %s2 = inlined_call_operand.vmem [shape: f32[1,128], index: 2, kind: input, shape index: {}]
  %s3 = inlined_call_operand.<no memory space> [shape: f32[1], index: 3, kind: input, shape index: {}]
  %s4 = inlined_call_operand.hbm [shape: bf16[128,256], index: 4, kind: input, shape index: {}]
  %s5 = inlined_call_operand.vmem [shape: f32[1,256], index: 5, kind: input, shape index: {}]
  %s6 = inlined_call_operand.<no memory space> [shape: f32[1], index: 6, kind: input, shape index: {}]
  %s7 = inlined_call_operand.hbm [shape: bf16[256,384], index: 7, kind: input, shape index: {}]
  %s8 = inlined_call_operand.vmem [shape: f32[1,384], index: 8, kind: input, shape index: {}]
  %s9 = inlined_call_operand.hbm [shape: f32[256,384], index: 9, kind: output, shape index: {}]
  %s10 = sld [smem:[#allocation0]]
  $region89: #{tpu_custom_call.1} parent=0
    _
  %s12 = ssub.s32 1, %s10
  %s13 = scalar_select 0, %s12, %s10
  %14 = sst [smem:[#allocation3]] %s3
  %15 = sst [smem:[#allocation4]] %s6
  $region1: #{tpu_custom_call.1} parent=0
    #allocation5 [shape = 'u8[131072]{0}', space=vmem, size = 0x20000, scoped, tag = 'input window, operand 0']
    #allocation6 [shape = 's32[2]{0}', space=sflag, size = 0x8, scoped, tag = 'scoped memory for tpu_custom_call.1']
    #allocation7 [shape = 's32[2]{0}', space=sflag, size = 0x8, scoped, tag = 'scoped memory for tpu_custom_call.1']
    #allocation8 [shape = 'u8[32768]{0}', space=vmem, size = 0x8000, scoped, tag = 'input window, operand 1, single buffered']
    #allocation9 [shape = 's32[1]{0}', space=sflag, size = 0x4, scoped, tag = 'scoped memory for tpu_custom_call.1']
    #allocation10 [shape = 'u8[65536]{0}', space=vmem, size = 0x10000, scoped, tag = 'input window, operand 4, single buffered']
    #allocation11 [shape = 'u8[131072]{0}', space=vmem, size = 0x20000, scoped, tag = 'input window, operand 7']
    #allocation12 [shape = 's32[2]{0}', space=sflag, size = 0x8, scoped, tag = 'scoped memory for tpu_custom_call.1']
    #allocation13 [shape = 'u8[131072]{0}', space=vmem, size = 0x20000, scoped, tag = 'output window, operand 0']
    %16 = vsyncpa [#allocation6], 0
    %s17 = scalar_lea.sflag [#allocation6], 1
    %18 = vsyncpa %s17, 0
    %19 = vsyncpa [#allocation9], 0
    %20 = vsyncpa [#allocation12], 0
    %s21 = scalar_lea.sflag [#allocation12], 1
    %22 = vsyncpa %s21, 0
    %23 = vsyncpa [#allocation7], 0
    %s24 = scalar_lea.sflag [#allocation7], 1
    %25 = vsyncpa %s24, 0
    loop: start=0, step=1, limit=8
    $region2: #{tpu_custom_call.1} parent=1 // loop_pre_header
      _
    $region3: #{tpu_custom_call.1} parent=1 // loop_header
      %s27 = sphi 0, %s31
      %p28 = scmp.ge.s32.totalorder %s27, 8
      %s34 = sphi 0, %s46
      %s35 = sphi 0, %s42
      %s36 = sphi 0, %s34
      %s37 = sphi 0, %s35
      %s38 = sphi 0, %s36
      %s39 = sphi 0, %s37
      %s49 = sphi 0, %s51
      %s52 = sphi 0, %s49
      %s53 = sphi 0, %s52
      %s69 = sphi 0, %s53
      %s73 = sphi 0, %s73
      %s75 = sphi 0, %s73
      %s76 = sphi 0, %s75
      %s90 = sphi 0, %s76
      %s94 = sphi 0, %s94
      %s96 = sphi 0, %s94
      %s97 = sphi 0, %s96
      %s111 = sphi 0, %s97
      %s115 = sphi 0, %s115
      %s117 = sphi 0, %s115
      %s118 = sphi 0, %s117
      %s132 = sphi 0, %s118
      %s136 = sphi 0, %s136
      %s138 = sphi 0, %s136
      %s139 = sphi 0, %s138
      %s153 = sphi 0, %s139
      %s157 = sphi 0, %s157
      %s159 = sphi 0, %s157
      %s160 = sphi 0, %s159
      %s174 = sphi 0, %s160
      %s178 = sphi 0, %s178
      %s180 = sphi 0, %s178
      %s181 = sphi 0, %s180
      %s195 = sphi 0, %s181
      %s201 = sphi 0, %s203
      %s204 = sphi 0, %s201
      %s205 = sphi 0, %s204
      %s221 = sphi 0, %s205
      %s227 = sphi 0, %s229
      %s230 = sphi 0, %s227
      %s231 = sphi 0, %s230
      %s247 = sphi 0, %s231
      %s255 = sphi 0, %s257
      %s258 = sphi 0, %s255
      %s259 = sphi 0, %s258
      %s275 = sphi 0, %s259
    $region4: #{tpu_custom_call.1} parent=1 // loop_header_branch
      %30 = sbr.rel (%p28) target = $region8
    $region5: #{tpu_custom_call.1} parent=1 // loop_body
      %s32 = ssub.s32 %s27, 1
      %s33 = ssub.s32 %s27, 2
      %s40 = sadd.s32 1, %s35
      %p41 = scmp.ge.s32.totalorder %s40, 3
      %s42 = scalar_select %p41, 0, %s40
      %s43 = sadd.s32 1, %s34
      %s44 = scalar_select %p41, %s43, %s34
      %p45 = scmp.ge.s32.totalorder %s44, 2
      %s46 = scalar_select %p45, 0, %s44
      %s47 = ssub.s32 %s34, %s46
      %p48 = scmp.eq.s32.totalorder %s47, 0
      %s50 = sadd.s32 %s49, 1
      %s51 = scalar_select %p48, %s49, %s50
      %p54 = pneg %p48
      %p55 = scmp.eq.s32.totalorder %s27, 5
      %p56 = por %p54, %p55
      %p57 = scmp.ne.s32.totalorder %s49, %s52
      %p58 = scmp.eq.s32.totalorder %s27, 0
      %p59 = por %p57, %p58
      %p60 = scmp.ne.s32.totalorder %s49, %s52
      %p61 = scmp.eq.s32.totalorder %s32, 5
      %p62 = por %p60, %p61
      %p63 = scmp.ne.s32.totalorder %s52, %s53
      %p64 = scmp.eq.s32.totalorder %s32, 0
      %p65 = por %p63, %p64
      %p66 = scmp.ne.s32.totalorder %s52, %s53
      %p67 = scmp.eq.s32.totalorder %s33, 5
      %p68 = por %p66, %p67
      %p70 = scmp.ne.s32.totalorder %s53, %s69
      %p71 = scmp.eq.s32.totalorder %s33, 0
      %p72 = por %p70, %p71
      %s74 = sadd.s32 %s73, 1
      %p77 = scmp.eq.s32.totalorder %s27, 5
      %p78 = scmp.ne.s32.totalorder %s73, %s75
      %p79 = scmp.eq.s32.totalorder %s27, 0
      %p80 = por %p78, %p79
      %p81 = scmp.ne.s32.totalorder %s73, %s75
      %p82 = scmp.eq.s32.totalorder %s32, 5
      %p83 = por %p81, %p82
      %p84 = scmp.ne.s32.totalorder %s75, %s76
      %p85 = scmp.eq.s32.totalorder %s32, 0
      %p86 = por %p84, %p85
      %p87 = scmp.ne.s32.totalorder %s75, %s76
      %p88 = scmp.eq.s32.totalorder %s33, 5
      %p89 = por %p87, %p88
      %p91 = scmp.ne.s32.totalorder %s76, %s90
      %p92 = scmp.eq.s32.totalorder %s33, 0
      %p93 = por %p91, %p92
      %s95 = sadd.s32 %s94, 1
      %p98 = scmp.eq.s32.totalorder %s27, 5
      %p99 = scmp.ne.s32.totalorder %s94, %s96
      %p100 = scmp.eq.s32.totalorder %s27, 0
      %p101 = por %p99, %p100
      %p102 = scmp.ne.s32.totalorder %s94, %s96
      %p103 = scmp.eq.s32.totalorder %s32, 5
      %p104 = por %p102, %p103
      %p105 = scmp.ne.s32.totalorder %s96, %s97
      %p106 = scmp.eq.s32.totalorder %s32, 0
      %p107 = por %p105, %p106
      %p108 = scmp.ne.s32.totalorder %s96, %s97
      %p109 = scmp.eq.s32.totalorder %s33, 5
      %p110 = por %p108, %p109
      %p112 = scmp.ne.s32.totalorder %s97, %s111
      %p113 = scmp.eq.s32.totalorder %s33, 0
      %p114 = por %p112, %p113
      %s116 = sadd.s32 %s115, 1
      %p119 = scmp.eq.s32.totalorder %s27, 5
      %p120 = scmp.ne.s32.totalorder %s115, %s117
      %p121 = scmp.eq.s32.totalorder %s27, 0
      %p122 = por %p120, %p121
      %p123 = scmp.ne.s32.totalorder %s115, %s117
      %p124 = scmp.eq.s32.totalorder %s32, 5
      %p125 = por %p123, %p124
      %p126 = scmp.ne.s32.totalorder %s117, %s118
      %p127 = scmp.eq.s32.totalorder %s32, 0
      %p128 = por %p126, %p127
      %p129 = scmp.ne.s32.totalorder %s117, %s118
      %p130 = scmp.eq.s32.totalorder %s33, 5
      %p131 = por %p129, %p130
      %p133 = scmp.ne.s32.totalorder %s118, %s132
      %p134 = scmp.eq.s32.totalorder %s33, 0
      %p135 = por %p133, %p134
      %s137 = sadd.s32 %s136, 1
      %p140 = scmp.eq.s32.totalorder %s27, 5
      %p141 = scmp.ne.s32.totalorder %s136, %s138
      %p142 = scmp.eq.s32.totalorder %s27, 0
      %p143 = por %p141, %p142
      %p144 = scmp.ne.s32.totalorder %s136, %s138
      %p145 = scmp.eq.s32.totalorder %s32, 5
      %p146 = por %p144, %p145
      %p147 = scmp.ne.s32.totalorder %s138, %s139
      %p148 = scmp.eq.s32.totalorder %s32, 0
      %p149 = por %p147, %p148
      %p150 = scmp.ne.s32.totalorder %s138, %s139
      %p151 = scmp.eq.s32.totalorder %s33, 5
      %p152 = por %p150, %p151
      %p154 = scmp.ne.s32.totalorder %s139, %s153
      %p155 = scmp.eq.s32.totalorder %s33, 0
      %p156 = por %p154, %p155
      %s158 = sadd.s32 %s157, 1
      %p161 = scmp.eq.s32.totalorder %s27, 5
      %p162 = scmp.ne.s32.totalorder %s157, %s159
      %p163 = scmp.eq.s32.totalorder %s27, 0
      %p164 = por %p162, %p163
      %p165 = scmp.ne.s32.totalorder %s157, %s159
      %p166 = scmp.eq.s32.totalorder %s32, 5
      %p167 = por %p165, %p166
      %p168 = scmp.ne.s32.totalorder %s159, %s160
      %p169 = scmp.eq.s32.totalorder %s32, 0
      %p170 = por %p168, %p169
      %p171 = scmp.ne.s32.totalorder %s159, %s160
      %p172 = scmp.eq.s32.totalorder %s33, 5
      %p173 = por %p171, %p172
      %p175 = scmp.ne.s32.totalorder %s160, %s174
      %p176 = scmp.eq.s32.totalorder %s33, 0
      %p177 = por %p175, %p176
      %s179 = sadd.s32 %s178, 1
      %p182 = scmp.eq.s32.totalorder %s27, 5
      %p183 = scmp.ne.s32.totalorder %s178, %s180
      %p184 = scmp.eq.s32.totalorder %s27, 0
      %p185 = por %p183, %p184
      %p186 = scmp.ne.s32.totalorder %s178, %s180
      %p187 = scmp.eq.s32.totalorder %s32, 5
      %p188 = por %p186, %p187
      %p189 = scmp.ne.s32.totalorder %s180, %s181
      %p190 = scmp.eq.s32.totalorder %s32, 0
      %p191 = por %p189, %p190
      %p192 = scmp.ne.s32.totalorder %s180, %s181
      %p193 = scmp.eq.s32.totalorder %s33, 5
      %p194 = por %p192, %p193
      %p196 = scmp.ne.s32.totalorder %s181, %s195
      %p197 = scmp.eq.s32.totalorder %s33, 0
      %p198 = por %p196, %p197
      %s199 = ssub.s32 %s35, %s42
      %p200 = scmp.eq.s32.totalorder %s199, 0
      %s202 = sadd.s32 %s201, 1
      %s203 = scalar_select %p200, %s201, %s202
      %p206 = pneg %p200
      %p207 = scmp.eq.s32.totalorder %s27, 5
      %p208 = por %p206, %p207
      %p209 = scmp.ne.s32.totalorder %s201, %s204
      %p210 = scmp.eq.s32.totalorder %s27, 0
      %p211 = por %p209, %p210
      %p212 = scmp.ne.s32.totalorder %s201, %s204
      %p213 = scmp.eq.s32.totalorder %s32, 5
      %p214 = por %p212, %p213
      %p215 = scmp.ne.s32.totalorder %s204, %s205
      %p216 = scmp.eq.s32.totalorder %s32, 0
      %p217 = por %p215, %p216
      %p218 = scmp.ne.s32.totalorder %s204, %s205
      %p219 = scmp.eq.s32.totalorder %s33, 5
      %p220 = por %p218, %p219
      %p222 = scmp.ne.s32.totalorder %s205, %s221
      %p223 = scmp.eq.s32.totalorder %s33, 0
      %p224 = por %p222, %p223
      %s225 = ssub.s32 %s35, %s42
      %p226 = scmp.eq.s32.totalorder %s225, 0
      %s228 = sadd.s32 %s227, 1
      %s229 = scalar_select %p226, %s227, %s228
      %p232 = pneg %p226
      %p233 = scmp.eq.s32.totalorder %s27, 5
      %p234 = por %p232, %p233
      %p235 = scmp.ne.s32.totalorder %s227, %s230
      %p236 = scmp.eq.s32.totalorder %s27, 0
      %p237 = por %p235, %p236
      %p238 = scmp.ne.s32.totalorder %s227, %s230
      %p239 = scmp.eq.s32.totalorder %s32, 5
      %p240 = por %p238, %p239
      %p241 = scmp.ne.s32.totalorder %s230, %s231
      %p242 = scmp.eq.s32.totalorder %s32, 0
      %p243 = por %p241, %p242
      %p244 = scmp.ne.s32.totalorder %s230, %s231
      %p245 = scmp.eq.s32.totalorder %s33, 5
      %p246 = por %p244, %p245
      %p248 = scmp.ne.s32.totalorder %s231, %s247
      %p249 = scmp.eq.s32.totalorder %s33, 0
      %p250 = por %p248, %p249
      %s251 = ssub.s32 %s34, %s46
      %s252 = ssub.s32 %s35, %s42
      %s253 = sor.u32 %s251, %s252
      %p254 = scmp.eq.s32.totalorder %s253, 0
      %s256 = sadd.s32 %s255, 1
      %s257 = scalar_select %p254, %s255, %s256
      %p260 = pneg %p254
      %p261 = scmp.eq.s32.totalorder %s27, 5
      %p262 = por %p260, %p261
      %p263 = scmp.ne.s32.totalorder %s255, %s258
      %p264 = scmp.eq.s32.totalorder %s27, 0
      %p265 = por %p263, %p264
      %p266 = scmp.ne.s32.totalorder %s255, %s258
      %p267 = scmp.eq.s32.totalorder %s32, 5
      %p268 = por %p266, %p267
      %p269 = scmp.ne.s32.totalorder %s258, %s259
      %p270 = scmp.eq.s32.totalorder %s32, 0
      %p271 = por %p269, %p270
      %p272 = scmp.ne.s32.totalorder %s258, %s259
      %p273 = scmp.eq.s32.totalorder %s33, 5
      %p274 = por %p272, %p273
      %p276 = scmp.ne.s32.totalorder %s259, %s275
      %p277 = scmp.eq.s32.totalorder %s33, 0
      %p278 = por %p276, %p277
      %p279 = scmp.le.s32.totalorder 1, %s27
      %p280 = scmp.lt.s32.totalorder %s27, 7
      %p281 = pnand %p279, %p280
      %p282 = pneg %p281
      // Predicated region
      $region9: #{tpu_custom_call.1} parent=5 // pred_check
        _
      $region10: #{tpu_custom_call.1} parent=5 // pred_check_branch
        %284 = sbr.rel (%p281) target = $region12
      $region11: #{tpu_custom_call.1} parent=5 // pred_region
        %s285 = ssub.s32 %s27, 1
        // Predicated region
        $region13: #{tpu_custom_call.1} parent=11 // pred_check
          %p286 = pneg %p86
        $region14: #{tpu_custom_call.1} parent=11 // pred_check_branch
          %288 = sbr.rel (%p286) target = $region16
        $region15: #{tpu_custom_call.1} parent=11 // pred_region
          %s290 = ssub.s32 1024, 1024
          %291 = vsyncadd [#allocation9], %s290
          %s292 = sshll.u32 [#allocation8], 4
          %s293 = int_to_ptr.vmem [resolvable:$true] %s292
          %298 = dma.hbm_to_vmem [thread:$0]  %s1, 1024, %s293, [#allocation9], 64, 64, 4
        $region16: #{tpu_custom_call.1} parent=11 // pred_fallthru
          _
        // Predicated region
        $region17: #{tpu_custom_call.1} parent=11 // pred_check
          %p299 = pneg %p107
        $region18: #{tpu_custom_call.1} parent=11 // pred_check_branch
          %301 = sbr.rel (%p299) target = $region20
        $region19: #{tpu_custom_call.1} parent=11 // pred_region
          _
        $region20: #{tpu_custom_call.1} parent=11 // pred_fallthru
          _
        // Predicated region
        $region21: #{tpu_custom_call.1} parent=11 // pred_check
          %p302 = pneg %p128
        $region22: #{tpu_custom_call.1} parent=11 // pred_check_branch
          %304 = sbr.rel (%p302) target = $region24
        $region23: #{tpu_custom_call.1} parent=11 // pred_region
          _
        $region24: #{tpu_custom_call.1} parent=11 // pred_fallthru
          _
        // Predicated region
        $region25: #{tpu_custom_call.1} parent=11 // pred_check
          %p305 = pneg %p149
        $region26: #{tpu_custom_call.1} parent=11 // pred_check_branch
          %307 = sbr.rel (%p305) target = $region28
        $region27: #{tpu_custom_call.1} parent=11 // pred_region
          %s309 = ssub.s32 2048, 2048
          %310 = vsyncadd [#allocation9], %s309
          %s311 = sshll.u32 [#allocation10], 4
          %s312 = int_to_ptr.vmem [resolvable:$true] %s311
          %317 = dma.hbm_to_vmem [thread:$0]  %s4, 2048, %s312, [#allocation9], 128, 128, 8
        $region28: #{tpu_custom_call.1} parent=11 // pred_fallthru
          _
        // Predicated region
        $region29: #{tpu_custom_call.1} parent=11 // pred_check
          %p318 = pneg %p170
        $region30: #{tpu_custom_call.1} parent=11 // pred_check_branch
          %320 = sbr.rel (%p318) target = $region32
        $region31: #{tpu_custom_call.1} parent=11 // pred_region
          _
        $region32: #{tpu_custom_call.1} parent=11 // pred_fallthru
          _
        // Predicated region
        $region33: #{tpu_custom_call.1} parent=11 // pred_check
          %p321 = pneg %p191
        $region34: #{tpu_custom_call.1} parent=11 // pred_check_branch
          %323 = sbr.rel (%p321) target = $region36
        $region35: #{tpu_custom_call.1} parent=11 // pred_region
          _
        $region36: #{tpu_custom_call.1} parent=11 // pred_fallthru
          _
      $region12: #{tpu_custom_call.1} parent=5 // pred_fallthru
        _
      %p324 = scmp.lt.s32.totalorder %s27, 6
      // Predicated region
      $region37: #{tpu_custom_call.1} parent=5 // pred_check
        %p325 = pneg %p324
      $region38: #{tpu_custom_call.1} parent=5 // pred_check_branch
        %327 = sbr.rel (%p325) target = $region40
      $region39: #{tpu_custom_call.1} parent=5 // pred_region
        // Predicated region
        $region41: #{tpu_custom_call.1} parent=39 // pred_check
          %p328 = pneg %p59
        $region42: #{tpu_custom_call.1} parent=39 // pred_check_branch
          %330 = sbr.rel (%p328) target = $region44
        $region43: #{tpu_custom_call.1} parent=39 // pred_region
          %s331 = sand.u32 %s49, 1
          %s332 = scalar_lea.sflag [#allocation6], %s331
          %s333 = sand.u32 %s49, 1
          %s334 = smul.addr %s333, 128
          %s335 = scalar_lea.vmem [#allocation5], %s334
          %s336 = smul.u32 16, %s34
          %s338 = ssub.s32 2048, 2048
          %339 = vsyncadd %s332, %s338
          %s340 = smul.addr %s336, 128
          %s341 = scalar_lea.hbm %s0, %s340
          %s342 = sshll.u32 %s335, 4
          %s343 = int_to_ptr.vmem [resolvable:$true] %s342
          %348 = dma.hbm_to_vmem [thread:$0]  %s341, 2048, %s343, %s332, 128, 128, 8
        $region44: #{tpu_custom_call.1} parent=39 // pred_fallthru
          _
        // Predicated region
        $region45: #{tpu_custom_call.1} parent=39 // pred_check
          %p349 = pneg %p211
        $region46: #{tpu_custom_call.1} parent=39 // pred_check_branch
          %351 = sbr.rel (%p349) target = $region48
        $region47: #{tpu_custom_call.1} parent=39 // pred_region
          %s352 = sand.u32 %s201, 1
          %s353 = scalar_lea.sflag [#allocation12], %s352
          %s354 = sand.u32 %s201, 1
          %s355 = smul.addr %s354, 128
          %s356 = scalar_lea.vmem [#allocation11], %s355
          %s358 = ssub.s32 2048, 2048
          %359 = vsyncadd %s353, %s358
          %s360 = smul.addr %s35, 64
          %s361 = scalar_lea.hbm %s7, %s360
          %s362 = sshll.u32 %s356, 4
          %s363 = int_to_ptr.vmem [resolvable:$true] %s362
          %368 = dma.hbm_to_vmem [thread:$0]  %s361, 2048, %s363, %s353, 192, 64, 4
        $region48: #{tpu_custom_call.1} parent=39 // pred_fallthru
          _
        // Predicated region
        $region49: #{tpu_custom_call.1} parent=39 // pred_check
          %p369 = pneg %p237
        $region50: #{tpu_custom_call.1} parent=39 // pred_check_branch
          %371 = sbr.rel (%p369) target = $region52
        $region51: #{tpu_custom_call.1} parent=39 // pred_region
          %p372 = scmp.lt.s32.totalorder %s35, 2
          %s373 = scalar_select %p372, %s35, 2
          %s374 = scalar_lea.vmem %s8, %s373
        $region52: #{tpu_custom_call.1} parent=39 // pred_fallthru
          _
      $region40: #{tpu_custom_call.1} parent=5 // pred_fallthru
        _
      %p375 = scmp.le.s32.totalorder 1, %s27
      %p376 = scmp.lt.s32.totalorder %s27, 7
      %p377 = pnand %p375, %p376
      %p378 = pneg %p377
      // Predicated region
      $region53: #{tpu_custom_call.1} parent=5 // pred_check
        _
      $region54: #{tpu_custom_call.1} parent=5 // pred_check_branch
        %380 = sbr.rel (%p377) target = $region56
      $region55: #{tpu_custom_call.1} parent=5 // pred_region
        %s381 = ssub.s32 %s27, 1
        %s382 = sand.u32 %s52, 1
        %s383 = scalar_lea.sflag [#allocation6], %s382
        %s384 = sand.u32 %s52, 1
        %s385 = smul.addr %s384, 128
        %s386 = scalar_lea.vmem [#allocation5], %s385
        // Predicated region
        $region57: #{tpu_custom_call.1} parent=55 // pred_check
          %p387 = pneg %p65
        $region58: #{tpu_custom_call.1} parent=55 // pred_check_branch
          %389 = sbr.rel (%p387) target = $region60
        $region59: #{tpu_custom_call.1} parent=55 // pred_region
          %390 = dma.done %s383, 2048
        $region60: #{tpu_custom_call.1} parent=55 // pred_fallthru
          _
        // Predicated region
        $region61: #{tpu_custom_call.1} parent=55 // pred_check
          %p391 = pneg %p86
        $region62: #{tpu_custom_call.1} parent=55 // pred_check_branch
          %393 = sbr.rel (%p391) target = $region64
        $region63: #{tpu_custom_call.1} parent=55 // pred_region
          %394 = dma.done [#allocation9], 1024
        $region64: #{tpu_custom_call.1} parent=55 // pred_fallthru
          _
        // Predicated region
        $region65: #{tpu_custom_call.1} parent=55 // pred_check
          %p395 = pneg %p149
        $region66: #{tpu_custom_call.1} parent=55 // pred_check_branch
          %397 = sbr.rel (%p395) target = $region68
        $region67: #{tpu_custom_call.1} parent=55 // pred_region
          %398 = dma.done [#allocation9], 2048
        $region68: #{tpu_custom_call.1} parent=55 // pred_fallthru
          _
        %s399 = sand.u32 %s204, 1
        %s400 = scalar_lea.sflag [#allocation12], %s399
        %s401 = sand.u32 %s204, 1
        %s402 = smul.addr %s401, 128
        %s403 = scalar_lea.vmem [#allocation11], %s402
        // Predicated region
        $region69: #{tpu_custom_call.1} parent=55 // pred_check
          %p404 = pneg %p217
        $region70: #{tpu_custom_call.1} parent=55 // pred_check_branch
          %406 = sbr.rel (%p404) target = $region72
        $region71: #{tpu_custom_call.1} parent=55 // pred_region
          %407 = dma.done %s400, 2048
        $region72: #{tpu_custom_call.1} parent=55 // pred_fallthru
          _
        %s408 = sand.u32 %s52, 1
        %s409 = scalar_lea.sflag [#allocation6], %s408
        %s410 = sand.u32 %s52, 1
        %s411 = smul.addr %s410, 128
        %s412 = scalar_lea.vmem [#allocation5], %s411
        %p413 = pneg %p65
        %p414 = pneg %p62
        %p415 = pneg %p86
        %p416 = pneg %p83
        %p417 = pneg %p107
        %p418 = pneg %p104
        %p419 = pneg %p128
        %p420 = pneg %p125
        %p421 = pneg %p149
        %p422 = pneg %p146
        %p423 = pneg %p170
        %p424 = pneg %p167
        %p425 = pneg %p191
        %p426 = pneg %p188
        %s427 = sand.u32 %s204, 1
        %s428 = scalar_lea.sflag [#allocation12], %s427
        %s429 = sand.u32 %s204, 1
        %s430 = smul.addr %s429, 128
        %s431 = scalar_lea.vmem [#allocation11], %s430
        %p432 = pneg %p217
        %p433 = pneg %p214
        %p434 = scmp.lt.s32.totalorder %s37, 2
        %s435 = scalar_select %p434, %s37, 2
        %s436 = scalar_lea.vmem %s8, %s435
        %p437 = pneg %p243
        %p438 = pneg %p240
        %p439 = pneg %p271
        %p440 = pneg %p268
        %s441 = sand.u32 %s258, 1
        %s442 = scalar_lea.sflag [#allocation7], %s441
        %s443 = sand.u32 %s258, 1
        %s444 = smul.addr %s443, 128
        %s445 = scalar_lea.vmem [#allocation13], %s444
        %s446 = smul.u32 16, %s36
        %p447 = scmp.lt.s32.totalorder %s37, 2
        %s448 = scalar_select %p447, %s37, 2
        %s449 = scalar_lea.vmem %s8, %s448
        %s450 = smul.u32 16, %s36
        %p452 = scmp.eq.s32.totalorder %s37, 0
        // Predicated region
        $region73: #{tpu_custom_call.1} parent=55 // pred_check
          %p453 = pneg %p452
        $region74: #{tpu_custom_call.1} parent=55 // pred_check_branch
          %455 = sbr.rel (%p453) target = $region76
        $region75: #{tpu_custom_call.1} parent=55 // pred_region
          %v456 = vld [vmem:[%s386] sm:$0xff]
          %v457 = vld [vmem:[%s386 + $0x8] sm:$0xff]
          %v458 = vld [vmem:[%s386 + $0x10] sm:$0xff]
          %v459 = vld [vmem:[%s386 + $0x18] sm:$0xff]
          %v460 = vld [vmem:[%s386 + $0x20] sm:$0xff]
          %v461 = vld [vmem:[%s386 + $0x28] sm:$0xff]
          %v462 = vld [vmem:[%s386 + $0x30] sm:$0xff]
          %v463 = vld [vmem:[%s386 + $0x38] sm:$0xff]
          %v464 = vld [vmem:[%s386 + $0x40] sm:$0xff]
          %v465 = vld [vmem:[%s386 + $0x48] sm:$0xff]
          %v466 = vld [vmem:[%s386 + $0x50] sm:$0xff]
          %v467 = vld [vmem:[%s386 + $0x58] sm:$0xff]
          %v468 = vld [vmem:[%s386 + $0x60] sm:$0xff]
          %v469 = vld [vmem:[%s386 + $0x68] sm:$0xff]
          %v470 = vld [vmem:[%s386 + $0x70] sm:$0xff]
          %v471 = vld [vmem:[%s386 + $0x78] sm:$0xff]
          %v472 = vpack.c.bf16 %v457, %v456
          %v473 = vpack.c.bf16 %v459, %v458
          %v474 = vpack.c.bf16 %v461, %v460
          %v475 = vpack.c.bf16 %v463, %v462
          %v476 = vpack.c.bf16 %v465, %v464
          %v477 = vpack.c.bf16 %v467, %v466
          %v478 = vpack.c.bf16 %v469, %v468
          %v479 = vpack.c.bf16 %v471, %v470
          %s480 = sld [smem:[#allocation3]]
          %s481 = sld [smem:[#allocation4]]
          %v482 = vld [vmem:[#allocation8] sm:$0xf]
          %v483 = vld [vmem:[#allocation8 + $0x4] sm:$0xf]
          %v484 = vld [vmem:[#allocation8 + $0x8] sm:$0xf]
          %v485 = vld [vmem:[#allocation8 + $0xc] sm:$0xf]
          %v486 = vld [vmem:[#allocation8 + $0x10] sm:$0xf]
          %v487 = vld [vmem:[#allocation8 + $0x14] sm:$0xf]
          %v488 = vld [vmem:[#allocation8 + $0x18] sm:$0xf]
          %v489 = vld [vmem:[#allocation8 + $0x1c] sm:$0xf]
          %v490 = vld [vmem:[#allocation8 + $0x20] sm:$0xf]
          %v491 = vld [vmem:[#allocation8 + $0x24] sm:$0xf]
          %v492 = vld [vmem:[#allocation8 + $0x28] sm:$0xf]
          %v493 = vld [vmem:[#allocation8 + $0x2c] sm:$0xf]
          %v494 = vld [vmem:[#allocation8 + $0x30] sm:$0xf]
          %v495 = vld [vmem:[#allocation8 + $0x34] sm:$0xf]
          %v496 = vld [vmem:[#allocation8 + $0x38] sm:$0xf]
          %v497 = vld [vmem:[#allocation8 + $0x3c] sm:$0xf]
          %v498 = vld [vmem:[%s2] sm:$0x1]
          %v500 = vlaneseq
          %v501 = vshrl.u32 %v500, 7
          %v502 = vsub.s32 0, %v501
          %v503 = vrot.slane %v498, %v502
          %v521 = vunpack.c.l.b16 %v482
          %v522 = vunpack.c.l.b16 %v483
          %v523 = vunpack.c.l.b16 %v484
          %v524 = vunpack.c.l.b16 %v485
          %v525 = vunpack.c.l.b16 %v486
          %v526 = vunpack.c.l.b16 %v487
          %v527 = vunpack.c.l.b16 %v488
          %v528 = vunpack.c.l.b16 %v489
          %v529 = vunpack.c.l.b16 %v490
          %v530 = vunpack.c.l.b16 %v491
          %v531 = vunpack.c.l.b16 %v492
          %v532 = vunpack.c.l.b16 %v493
          %v533 = vunpack.c.l.b16 %v494
          %v534 = vunpack.c.l.b16 %v495
          %v535 = vunpack.c.l.b16 %v496
          %v536 = vunpack.c.l.b16 %v497
          %v537 = vpack.c.b16 %v522, %v521
          %v538 = vpack.c.b16 %v524, %v523
          %v539 = vpack.c.b16 %v526, %v525
          %v540 = vpack.c.b16 %v528, %v527
          %v541 = vpack.c.b16 %v530, %v529
          %v542 = vpack.c.b16 %v532, %v531
          %v543 = vpack.c.b16 %v534, %v533
          %v544 = vpack.c.b16 %v536, %v535
          %553 = vmatprep.subr.bf16.mxu0 0
          %554 = vmatpush1.bf16.msra.mxu0 %v537
          %555 = vmatprep.subr.bf16.mxu0 0
          %556 = vmatpush1.bf16.msra.mxu0 %v538
          %557 = vmatprep.subr.bf16.mxu0 0
          %558 = vmatpush1.bf16.msra.mxu0 %v539
          %559 = vmatprep.subr.bf16.mxu0 0
          %560 = vmatpush1.bf16.msra.mxu0 %v540
          %561 = vmatprep.subr.bf16.mxu0 0
          %562 = vmatpush1.bf16.msra.mxu0 %v541
          %563 = vmatprep.subr.bf16.mxu0 0
          %564 = vmatpush1.bf16.msra.mxu0 %v542
          %565 = vmatprep.subr.bf16.mxu0 0
          %566 = vmatpush1.bf16.msra.mxu0 %v543
          %567 = vmatprep.subr.bf16.mxu0 0
          %568 = vmatpush1.bf16.msra.mxu0 %v544
          %569 = vmatprep.subr.bf16.mxu0 0
          %570 = vmatpush1.bf16.msra.mxu0 0
          %571 = vmatprep.subr.bf16.mxu0 0
          %572 = vmatpush1.bf16.msra.mxu0 0
          %573 = vmatprep.subr.bf16.mxu0 0
          %574 = vmatpush1.bf16.msra.mxu0 0
          %575 = vmatprep.subr.bf16.mxu0 0
          %576 = vmatpush1.bf16.msra.mxu0 0
          %577 = vmatprep.subr.bf16.mxu0 0
          %578 = vmatpush1.bf16.msra.mxu0 0
          %579 = vmatprep.subr.bf16.mxu0 0
          %580 = vmatpush1.bf16.msra.mxu0 0
          %581 = vmatprep.subr.bf16.mxu0 0
          %582 = vmatpush1.bf16.msra.mxu0 0
          %583 = vmatprep.subr.bf16.mxu0 0
          %584 = vmatpush1.bf16.msra.mxu0 0
          %585 = vmatprep.mubr.bf16.mxu0 0
          %586 = vmatmul.mubr.bf16.gmra.mrb[0].mxu0 %v472
          %v587 = vpop.f32.mrb[0].mxu0
          %v588 = vadd.f32 %v503, %v587
          %v589 = vpop.f32.mrb[0].mxu0
          %v590 = vpop.f32.mrb[0].mxu0
          %v591 = vadd.f32 %v503, %v590
          %v592 = vpop.f32.mrb[0].mxu0
          %593 = vmatprep.mubr.bf16.mxu0 0
          %594 = vmatmul.mubr.bf16.gmra.mrb[0].mxu0 %v473
          %v595 = vpop.f32.mrb[0].mxu0
          %v596 = vadd.f32 %v503, %v595
          %v597 = vpop.f32.mrb[0].mxu0
          %v598 = vpop.f32.mrb[0].mxu0
          %v599 = vadd.f32 %v503, %v598
          %v600 = vpop.f32.mrb[0].mxu0
          %601 = vmatprep.mubr.bf16.mxu0 0
          %602 = vmatmul.mubr.bf16.gmra.mrb[0].mxu0 %v474
          %v603 = vpop.f32.mrb[0].mxu0
          %v604 = vadd.f32 %v503, %v603
          %v605 = vpop.f32.mrb[0].mxu0
          %v606 = vpop.f32.mrb[0].mxu0
          %v607 = vadd.f32 %v503, %v606
          %v608 = vpop.f32.mrb[0].mxu0
          %609 = vmatprep.mubr.bf16.mxu0 0
          %610 = vmatmul.mubr.bf16.gmra.mrb[0].mxu0 %v475
          %v611 = vpop.f32.mrb[0].mxu0
          %v612 = vadd.f32 %v503, %v611
          %v613 = vpop.f32.mrb[0].mxu0
          %v614 = vpop.f32.mrb[0].mxu0
          %v615 = vadd.f32 %v503, %v614
          %v616 = vpop.f32.mrb[0].mxu0
          %617 = vmatprep.mubr.bf16.mxu0 0
          %618 = vmatmul.mubr.bf16.gmra.mrb[0].mxu0 %v476
          %v619 = vpop.f32.mrb[0].mxu0
          %v620 = vadd.f32 %v503, %v619
          %v621 = vpop.f32.mrb[0].mxu0
          %v622 = vpop.f32.mrb[0].mxu0
          %v623 = vadd.f32 %v503, %v622
          %v624 = vpop.f32.mrb[0].mxu0
          %625 = vmatprep.mubr.bf16.mxu0 0
          %626 = vmatmul.mubr.bf16.gmra.mrb[0].mxu0 %v477
          %v627 = vpop.f32.mrb[0].mxu0
          %v628 = vadd.f32 %v503, %v627
          %v629 = vpop.f32.mrb[0].mxu0
          %v630 = vpop.f32.mrb[0].mxu0
          %v631 = vadd.f32 %v503, %v630
          %v632 = vpop.f32.mrb[0].mxu0
          %633 = vmatprep.mubr.bf16.mxu0 0
          %634 = vmatmul.mubr.bf16.gmra.mrb[0].mxu0 %v478
          %v635 = vpop.f32.mrb[0].mxu0
          %v636 = vadd.f32 %v503, %v635
          %v637 = vpop.f32.mrb[0].mxu0
          %v638 = vpop.f32.mrb[0].mxu0
          %v639 = vadd.f32 %v503, %v638
          %v640 = vpop.f32.mrb[0].mxu0
          %641 = vmatprep.mubr.bf16.mxu0 0
          %642 = vmatmul.mubr.bf16.gmra.mrb[0].mxu0 %v479
          %v643 = vpop.f32.mrb[0].mxu0
          %v644 = vadd.f32 %v503, %v643
          %v645 = vpop.f32.mrb[0].mxu0
          %v646 = vpop.f32.mrb[0].mxu0
          %v647 = vadd.f32 %v503, %v646
          %v648 = vpop.f32.mrb[0].mxu0
          %649 = vdwg.mxu0
          %vm650 = vcmp.gt.f32.partialorder %v588, 0.0
          %vm651 = vcmp.gt.f32.partialorder %v591, 0.0
          %vm652 = vcmp.gt.f32.partialorder %v596, 0.0
          %vm653 = vcmp.gt.f32.partialorder %v599, 0.0
          %vm654 = vcmp.gt.f32.partialorder %v604, 0.0
          %vm655 = vcmp.gt.f32.partialorder %v607, 0.0
          %vm656 = vcmp.gt.f32.partialorder %v612, 0.0
          %vm657 = vcmp.gt.f32.partialorder %v615, 0.0
          %vm658 = vcmp.gt.f32.partialorder %v620, 0.0
          %vm659 = vcmp.gt.f32.partialorder %v623, 0.0
          %vm660 = vcmp.gt.f32.partialorder %v628, 0.0
          %vm661 = vcmp.gt.f32.partialorder %v631, 0.0
          %vm662 = vcmp.gt.f32.partialorder %v636, 0.0
          %vm663 = vcmp.gt.f32.partialorder %v639, 0.0
          %vm664 = vcmp.gt.f32.partialorder %v644, 0.0
          %vm665 = vcmp.gt.f32.partialorder %v647, 0.0
          %v666 = vstv %s480
          %v667 = vmul.f32 %v666, %v588
          %v668 = vmul.f32 %v666, %v591
          %v669 = vmul.f32 %v666, %v596
          %v670 = vmul.f32 %v666, %v599
          %v671 = vmul.f32 %v666, %v604
          %v672 = vmul.f32 %v666, %v607
          %v673 = vmul.f32 %v666, %v612
          %v674 = vmul.f32 %v666, %v615
          %v675 = vmul.f32 %v666, %v620
          %v676 = vmul.f32 %v666, %v623
          %v677 = vmul.f32 %v666, %v628
          %v678 = vmul.f32 %v666, %v631
          %v679 = vmul.f32 %v666, %v636
          %v680 = vmul.f32 %v666, %v639
          %v681 = vmul.f32 %v666, %v644
          %v682 = vmul.f32 %v666, %v647
          %v683 = vsel %vm650, %v588, %v667
          %v684 = vsel %vm651, %v591, %v668
          %v685 = vsel %vm652, %v596, %v669
          %v686 = vsel %vm653, %v599, %v670
          %v687 = vsel %vm654, %v604, %v671
          %v688 = vsel %vm655, %v607, %v672
          %v689 = vsel %vm656, %v612, %v673
          %v690 = vsel %vm657, %v615, %v674
          %v691 = vsel %vm658, %v620, %v675
          %v692 = vsel %vm659, %v623, %v676
          %v693 = vsel %vm660, %v628, %v677
          %v694 = vsel %vm661, %v631, %v678
          %v695 = vsel %vm662, %v636, %v679
          %v696 = vsel %vm663, %v639, %v680
          %v697 = vsel %vm664, %v644, %v681
          %v698 = vsel %vm665, %v647, %v682
          %v699 = vpack.c.bf16 %v684, %v683
          %v700 = vpack.c.bf16 %v686, %v685
          %v701 = vpack.c.bf16 %v688, %v687
          %v702 = vpack.c.bf16 %v690, %v689
          %v703 = vpack.c.bf16 %v692, %v691
          %v704 = vpack.c.bf16 %v694, %v693
          %v705 = vpack.c.bf16 %v696, %v695
          %v706 = vpack.c.bf16 %v698, %v697
          %v707 = vld [vmem:[#allocation10] sm:$0xff]
          %v708 = vld [vmem:[#allocation10 + $0x8] sm:$0xff]
          %v709 = vld [vmem:[#allocation10 + $0x10] sm:$0xff]
          %v710 = vld [vmem:[#allocation10 + $0x18] sm:$0xff]
          %v711 = vld [vmem:[#allocation10 + $0x20] sm:$0xff]
          %v712 = vld [vmem:[#allocation10 + $0x28] sm:$0xff]
          %v713 = vld [vmem:[#allocation10 + $0x30] sm:$0xff]
          %v714 = vld [vmem:[#allocation10 + $0x38] sm:$0xff]
          %v715 = vld [vmem:[#allocation10 + $0x40] sm:$0xff]
          %v716 = vld [vmem:[#allocation10 + $0x48] sm:$0xff]
          %v717 = vld [vmem:[#allocation10 + $0x50] sm:$0xff]
          %v718 = vld [vmem:[#allocation10 + $0x58] sm:$0xff]
          %v719 = vld [vmem:[#allocation10 + $0x60] sm:$0xff]
          %v720 = vld [vmem:[#allocation10 + $0x68] sm:$0xff]
          %v721 = vld [vmem:[#allocation10 + $0x70] sm:$0xff]
          %v722 = vld [vmem:[#allocation10 + $0x78] sm:$0xff]
          %v723 = vld [vmem:[%s5] sm:$0x3]
          %v725 = vlaneseq
          %v726 = vshrl.u32 %v725, 7
          %v727 = vsub.s32 0, %v726
          %v728 = vrot.slane %v723, %v727
          %v729 = vlaneseq
          %v730 = vshrl.u32 %v729, 7
          %v731 = vsub.s32 1, %v730
          %v732 = vrot.slane %v723, %v731
          %v751 = vunpack.c.l.b16 %v707
          %v752 = vunpack.c.h.b16 %v707
          %v753 = vunpack.c.l.b16 %v708
          %v754 = vunpack.c.h.b16 %v708
          %v755 = vunpack.c.l.b16 %v709
          %v756 = vunpack.c.h.b16 %v709
          %v757 = vunpack.c.l.b16 %v710
          %v758 = vunpack.c.h.b16 %v710
          %v759 = vunpack.c.l.b16 %v711
          %v760 = vunpack.c.h.b16 %v711
          %v761 = vunpack.c.l.b16 %v712
          %v762 = vunpack.c.h.b16 %v712
          %v763 = vunpack.c.l.b16 %v713
          %v764 = vunpack.c.h.b16 %v713
          %v765 = vunpack.c.l.b16 %v714
          %v766 = vunpack.c.h.b16 %v714
          %v767 = vunpack.c.l.b16 %v715
          %v768 = vunpack.c.h.b16 %v715
          %v769 = vunpack.c.l.b16 %v716
          %v770 = vunpack.c.h.b16 %v716
          %v771 = vunpack.c.l.b16 %v717
          %v772 = vunpack.c.h.b16 %v717
          %v773 = vunpack.c.l.b16 %v718
          %v774 = vunpack.c.h.b16 %v718
          %v775 = vunpack.c.l.b16 %v719
          %v776 = vunpack.c.h.b16 %v719
          %v777 = vunpack.c.l.b16 %v720
          %v778 = vunpack.c.h.b16 %v720
          %v779 = vunpack.c.l.b16 %v721
          %v780 = vunpack.c.h.b16 %v721
          %v781 = vunpack.c.l.b16 %v722
          %v782 = vunpack.c.h.b16 %v722
          %v783 = vpack.c.b16 %v753, %v751
          %v784 = vpack.c.b16 %v754, %v752
          %v785 = vpack.c.b16 %v757, %v755
          %v786 = vpack.c.b16 %v758, %v756
          %v787 = vpack.c.b16 %v761, %v759
          %v788 = vpack.c.b16 %v762, %v760
          %v789 = vpack.c.b16 %v765, %v763
          %v790 = vpack.c.b16 %v766, %v764
          %v791 = vpack.c.b16 %v769, %v767
          %v792 = vpack.c.b16 %v770, %v768
          %v793 = vpack.c.b16 %v773, %v771
          %v794 = vpack.c.b16 %v774, %v772
          %v795 = vpack.c.b16 %v777, %v775
          %v796 = vpack.c.b16 %v778, %v776
          %v797 = vpack.c.b16 %v781, %v779
          %v798 = vpack.c.b16 %v782, %v780
          %815 = vmatprep.subr.bf16.mxu0 %v784
          %816 = vmatpush1.bf16.msra.mxu0 %v783
          %817 = vmatprep.subr.bf16.mxu0 %v786
          %818 = vmatpush1.bf16.msra.mxu0 %v785
          %819 = vmatprep.subr.bf16.mxu0 %v788
          %820 = vmatpush1.bf16.msra.mxu0 %v787
          %821 = vmatprep.subr.bf16.mxu0 %v790
          %822 = vmatpush1.bf16.msra.mxu0 %v789
          %823 = vmatprep.subr.bf16.mxu0 %v792
          %824 = vmatpush1.bf16.msra.mxu0 %v791
          %825 = vmatprep.subr.bf16.mxu0 %v794
          %826 = vmatpush1.bf16.msra.mxu0 %v793
          %827 = vmatprep.subr.bf16.mxu0 %v796
          %828 = vmatpush1.bf16.msra.mxu0 %v795
          %829 = vmatprep.subr.bf16.mxu0 %v798
          %830 = vmatpush1.bf16.msra.mxu0 %v797
          %831 = vmatprep.subr.bf16.mxu0 0
          %832 = vmatpush1.bf16.msra.mxu0 0
          %833 = vmatprep.subr.bf16.mxu0 0
          %834 = vmatpush1.bf16.msra.mxu0 0
          %835 = vmatprep.subr.bf16.mxu0 0
          %836 = vmatpush1.bf16.msra.mxu0 0
          %837 = vmatprep.subr.bf16.mxu0 0
          %838 = vmatpush1.bf16.msra.mxu0 0
          %839 = vmatprep.subr.bf16.mxu0 0
          %840 = vmatpush1.bf16.msra.mxu0 0
          %841 = vmatprep.subr.bf16.mxu0 0
          %842 = vmatpush1.bf16.msra.mxu0 0
          %843 = vmatprep.subr.bf16.mxu0 0
          %844 = vmatpush1.bf16.msra.mxu0 0
          %845 = vmatprep.subr.bf16.mxu0 0
          %846 = vmatpush1.bf16.msra.mxu0 0
          %847 = vmatprep.mubr.bf16.mxu0 0
          %848 = vmatmul.mubr.bf16.gmra.mrb[0].mxu0 %v699
          %v849 = vpop.f32.mrb[0].mxu0
          %v850 = vadd.f32 %v728, %v849
          %v851 = vpop.f32.mrb[0].mxu0
          %v852 = vadd.f32 %v732, %v851
          %v853 = vpop.f32.mrb[0].mxu0
          %v854 = vadd.f32 %v728, %v853
          %v855 = vpop.f32.mrb[0].mxu0
          %v856 = vadd.f32 %v732, %v855
          %857 = vmatprep.mubr.bf16.mxu0 0
          %858 = vmatmul.mubr.bf16.gmra.mrb[0].mxu0 %v700
          %v859 = vpop.f32.mrb[0].mxu0
          %v860 = vadd.f32 %v728, %v859
          %v861 = vpop.f32.mrb[0].mxu0
          %v862 = vadd.f32 %v732, %v861
          %v863 = vpop.f32.mrb[0].mxu0
          %v864 = vadd.f32 %v728, %v863
          %v865 = vpop.f32.mrb[0].mxu0
          %v866 = vadd.f32 %v732, %v865
          %867 = vmatprep.mubr.bf16.mxu0 0
          %868 = vmatmul.mubr.bf16.gmra.mrb[0].mxu0 %v701
          %v869 = vpop.f32.mrb[0].mxu0
          %v870 = vadd.f32 %v728, %v869
          %v871 = vpop.f32.mrb[0].mxu0
          %v872 = vadd.f32 %v732, %v871
          %v873 = vpop.f32.mrb[0].mxu0
          %v874 = vadd.f32 %v728, %v873
          %v875 = vpop.f32.mrb[0].mxu0
          %v876 = vadd.f32 %v732, %v875
          %877 = vmatprep.mubr.bf16.mxu0 0
          %878 = vmatmul.mubr.bf16.gmra.mrb[0].mxu0 %v702
          %v879 = vpop.f32.mrb[0].mxu0
          %v880 = vadd.f32 %v728, %v879
          %v881 = vpop.f32.mrb[0].mxu0
          %v882 = vadd.f32 %v732, %v881
          %v883 = vpop.f32.mrb[0].mxu0
          %v884 = vadd.f32 %v728, %v883
          %v885 = vpop.f32.mrb[0].mxu0
          %v886 = vadd.f32 %v732, %v885
          %887 = vmatprep.mubr.bf16.mxu0 0
          %888 = vmatmul.mubr.bf16.gmra.mrb[0].mxu0 %v703
          %v889 = vpop.f32.mrb[0].mxu0
          %v890 = vadd.f32 %v728, %v889
          %v891 = vpop.f32.mrb[0].mxu0
          %v892 = vadd.f32 %v732, %v891
          %v893 = vpop.f32.mrb[0].mxu0
          %v894 = vadd.f32 %v728, %v893
          %v895 = vpop.f32.mrb[0].mxu0
          %v896 = vadd.f32 %v732, %v895
          %897 = vmatprep.mubr.bf16.mxu0 0
          %898 = vmatmul.mubr.bf16.gmra.mrb[0].mxu0 %v704
          %v899 = vpop.f32.mrb[0].mxu0
          %v900 = vadd.f32 %v728, %v899
          %v901 = vpop.f32.mrb[0].mxu0
          %v902 = vadd.f32 %v732, %v901
          %v903 = vpop.f32.mrb[0].mxu0
          %v904 = vadd.f32 %v728, %v903
          %v905 = vpop.f32.mrb[0].mxu0
          %v906 = vadd.f32 %v732, %v905
          %907 = vmatprep.mubr.bf16.mxu0 0
          %908 = vmatmul.mubr.bf16.gmra.mrb[0].mxu0 %v705
          %v909 = vpop.f32.mrb[0].mxu0
          %v910 = vadd.f32 %v728, %v909
          %v911 = vpop.f32.mrb[0].mxu0
          %v912 = vadd.f32 %v732, %v911
          %v913 = vpop.f32.mrb[0].mxu0
          %v914 = vadd.f32 %v728, %v913
          %v915 = vpop.f32.mrb[0].mxu0
          %v916 = vadd.f32 %v732, %v915
          %917 = vmatprep.mubr.bf16.mxu0 0
          %918 = vmatmul.mubr.bf16.gmra.mrb[0].mxu0 %v706
          %v919 = vpop.f32.mrb[0].mxu0
          %v920 = vadd.f32 %v728, %v919
          %v921 = vpop.f32.mrb[0].mxu0
          %v922 = vadd.f32 %v732, %v921
          %v923 = vpop.f32.mrb[0].mxu0
          %v924 = vadd.f32 %v728, %v923
          %v925 = vpop.f32.mrb[0].mxu0
          %v926 = vadd.f32 %v732, %v925
          %927 = vdwg.mxu0
          %vm928 = vcmp.gt.f32.partialorder %v850, 0.0
          %vm929 = vcmp.gt.f32.partialorder %v852, 0.0
          %vm930 = vcmp.gt.f32.partialorder %v854, 0.0
          %vm931 = vcmp.gt.f32.partialorder %v856, 0.0
          %vm932 = vcmp.gt.f32.partialorder %v860, 0.0
          %vm933 = vcmp.gt.f32.partialorder %v862, 0.0
          %vm934 = vcmp.gt.f32.partialorder %v864, 0.0
          %vm935 = vcmp.gt.f32.partialorder %v866, 0.0
          %vm936 = vcmp.gt.f32.partialorder %v870, 0.0
          %vm937 = vcmp.gt.f32.partialorder %v872, 0.0
          %vm938 = vcmp.gt.f32.partialorder %v874, 0.0
          %vm939 = vcmp.gt.f32.partialorder %v876, 0.0
          %vm940 = vcmp.gt.f32.partialorder %v880, 0.0
          %vm941 = vcmp.gt.f32.partialorder %v882, 0.0
          %vm942 = vcmp.gt.f32.partialorder %v884, 0.0
          %vm943 = vcmp.gt.f32.partialorder %v886, 0.0
          %vm944 = vcmp.gt.f32.partialorder %v890, 0.0
          %vm945 = vcmp.gt.f32.partialorder %v892, 0.0
          %vm946 = vcmp.gt.f32.partialorder %v894, 0.0
          %vm947 = vcmp.gt.f32.partialorder %v896, 0.0
          %vm948 = vcmp.gt.f32.partialorder %v900, 0.0
          %vm949 = vcmp.gt.f32.partialorder %v902, 0.0
          %vm950 = vcmp.gt.f32.partialorder %v904, 0.0
          %vm951 = vcmp.gt.f32.partialorder %v906, 0.0
          %vm952 = vcmp.gt.f32.partialorder %v910, 0.0
          %vm953 = vcmp.gt.f32.partialorder %v912, 0.0
          %vm954 = vcmp.gt.f32.partialorder %v914, 0.0
          %vm955 = vcmp.gt.f32.partialorder %v916, 0.0
          %vm956 = vcmp.gt.f32.partialorder %v920, 0.0
          %vm957 = vcmp.gt.f32.partialorder %v922, 0.0
          %vm958 = vcmp.gt.f32.partialorder %v924, 0.0
          %vm959 = vcmp.gt.f32.partialorder %v926, 0.0
          %v960 = vstv %s481
          %v961 = vmul.f32 %v960, %v850
          %v962 = vmul.f32 %v960, %v852
          %v963 = vmul.f32 %v960, %v854
          %v964 = vmul.f32 %v960, %v856
          %v965 = vmul.f32 %v960, %v860
          %v966 = vmul.f32 %v960, %v862
          %v967 = vmul.f32 %v960, %v864
          %v968 = vmul.f32 %v960, %v866
          %v969 = vmul.f32 %v960, %v870
          %v970 = vmul.f32 %v960, %v872
          %v971 = vmul.f32 %v960, %v874
          %v972 = vmul.f32 %v960, %v876
          %v973 = vmul.f32 %v960, %v880
          %v974 = vmul.f32 %v960, %v882
          %v975 = vmul.f32 %v960, %v884
          %v976 = vmul.f32 %v960, %v886
          %v977 = vmul.f32 %v960, %v890
          %v978 = vmul.f32 %v960, %v892
          %v979 = vmul.f32 %v960, %v894
          %v980 = vmul.f32 %v960, %v896
          %v981 = vmul.f32 %v960, %v900
          %v982 = vmul.f32 %v960, %v902
          %v983 = vmul.f32 %v960, %v904
          %v984 = vmul.f32 %v960, %v906
          %v985 = vmul.f32 %v960, %v910
          %v986 = vmul.f32 %v960, %v912
          %v987 = vmul.f32 %v960, %v914
          %v988 = vmul.f32 %v960, %v916
          %v989 = vmul.f32 %v960, %v920
          %v990 = vmul.f32 %v960, %v922
          %v991 = vmul.f32 %v960, %v924
          %v992 = vmul.f32 %v960, %v926
          %v993 = vsel %vm928, %v850, %v961
          %v994 = vsel %vm929, %v852, %v962
          %v995 = vsel %vm930, %v854, %v963
          %v996 = vsel %vm931, %v856, %v964
          %v997 = vsel %vm932, %v860, %v965
          %v998 = vsel %vm933, %v862, %v966
          %v999 = vsel %vm934, %v864, %v967
          %v1000 = vsel %vm935, %v866, %v968
          %v1001 = vsel %vm936, %v870, %v969
          %v1002 = vsel %vm937, %v872, %v970
          %v1003 = vsel %vm938, %v874, %v971
          %v1004 = vsel %vm939, %v876, %v972
          %v1005 = vsel %vm940, %v880, %v973
          %v1006 = vsel %vm941, %v882, %v974
          %v1007 = vsel %vm942, %v884, %v975
          %v1008 = vsel %vm943, %v886, %v976
          %v1009 = vsel %vm944, %v890, %v977
          %v1010 = vsel %vm945, %v892, %v978
          %v1011 = vsel %vm946, %v894, %v979
          %v1012 = vsel %vm947, %v896, %v980
          %v1013 = vsel %vm948, %v900, %v981
          %v1014 = vsel %vm949, %v902, %v982
          %v1015 = vsel %vm950, %v904, %v983
          %v1016 = vsel %vm951, %v906, %v984
          %v1017 = vsel %vm952, %v910, %v985
          %v1018 = vsel %vm953, %v912, %v986
          %v1019 = vsel %vm954, %v914, %v987
          %v1020 = vsel %vm955, %v916, %v988
          %v1021 = vsel %vm956, %v920, %v989
          %v1022 = vsel %vm957, %v922, %v990
          %v1023 = vsel %vm958, %v924, %v991
          %v1024 = vsel %vm959, %v926, %v992
          %v1025 = vpack.c.bf16 %v995, %v993
          %v1026 = vpack.c.bf16 %v996, %v994
          %v1027 = vpack.c.bf16 %v999, %v997
          %v1028 = vpack.c.bf16 %v1000, %v998
          %v1029 = vpack.c.bf16 %v1003, %v1001
          %v1030 = vpack.c.bf16 %v1004, %v1002
          %v1031 = vpack.c.bf16 %v1007, %v1005
          %v1032 = vpack.c.bf16 %v1008, %v1006
          %v1033 = vpack.c.bf16 %v1011, %v1009
          %v1034 = vpack.c.bf16 %v1012, %v1010
          %v1035 = vpack.c.bf16 %v1015, %v1013
          %v1036 = vpack.c.bf16 %v1016, %v1014
          %v1037 = vpack.c.bf16 %v1019, %v1017
          %v1038 = vpack.c.bf16 %v1020, %v1018
          %v1039 = vpack.c.bf16 %v1023, %v1021
          %v1040 = vpack.c.bf16 %v1024, %v1022
          %1041 = vst [vmem:[#allocation2] sm:$0xff] %v1025
          %1042 = vst [vmem:[#allocation2 + $0x8] sm:$0xff] %v1026
          %1043 = vst [vmem:[#allocation2 + $0x10] sm:$0xff] %v1027
          %1044 = vst [vmem:[#allocation2 + $0x18] sm:$0xff] %v1028
          %1045 = vst [vmem:[#allocation2 + $0x20] sm:$0xff] %v1029
          %1046 = vst [vmem:[#allocation2 + $0x28] sm:$0xff] %v1030
          %1047 = vst [vmem:[#allocation2 + $0x30] sm:$0xff] %v1031
          %1048 = vst [vmem:[#allocation2 + $0x38] sm:$0xff] %v1032
          %1049 = vst [vmem:[#allocation2 + $0x40] sm:$0xff] %v1033
          %1050 = vst [vmem:[#allocation2 + $0x48] sm:$0xff] %v1034
          %1051 = vst [vmem:[#allocation2 + $0x50] sm:$0xff] %v1035
          %1052 = vst [vmem:[#allocation2 + $0x58] sm:$0xff] %v1036
          %1053 = vst [vmem:[#allocation2 + $0x60] sm:$0xff] %v1037
          %1054 = vst [vmem:[#allocation2 + $0x68] sm:$0xff] %v1038
          %1055 = vst [vmem:[#allocation2 + $0x70] sm:$0xff] %v1039
          %1056 = vst [vmem:[#allocation2 + $0x78] sm:$0xff] %v1040
        $region76: #{tpu_custom_call.1} parent=55 // pred_fallthru
          _
        %v1057 = vld [vmem:[#allocation2] sm:$0xff]
        %v1058 = vld [vmem:[#allocation2 + $0x8] sm:$0xff]
        %v1059 = vld [vmem:[#allocation2 + $0x10] sm:$0xff]
        %v1060 = vld [vmem:[#allocation2 + $0x18] sm:$0xff]
        %v1061 = vld [vmem:[#allocation2 + $0x20] sm:$0xff]
        %v1062 = vld [vmem:[#allocation2 + $0x28] sm:$0xff]
        %v1063 = vld [vmem:[#allocation2 + $0x30] sm:$0xff]
        %v1064 = vld [vmem:[#allocation2 + $0x38] sm:$0xff]
        %v1065 = vld [vmem:[#allocation2 + $0x40] sm:$0xff]
        %v1066 = vld [vmem:[#allocation2 + $0x48] sm:$0xff]
        %v1067 = vld [vmem:[#allocation2 + $0x50] sm:$0xff]
        %v1068 = vld [vmem:[#allocation2 + $0x58] sm:$0xff]
        %v1069 = vld [vmem:[#allocation2 + $0x60] sm:$0xff]
        %v1070 = vld [vmem:[#allocation2 + $0x68] sm:$0xff]
        %v1071 = vld [vmem:[#allocation2 + $0x70] sm:$0xff]
        %v1072 = vld [vmem:[#allocation2 + $0x78] sm:$0xff]
        %v1073 = vld [vmem:[%s403] sm:$0xf]
        %v1074 = vld [vmem:[%s403 + $0x4] sm:$0xf]
        %v1075 = vld [vmem:[%s403 + $0x8] sm:$0xf]
        %v1076 = vld [vmem:[%s403 + $0xc] sm:$0xf]
        %v1077 = vld [vmem:[%s403 + $0x10] sm:$0xf]
        %v1078 = vld [vmem:[%s403 + $0x14] sm:$0xf]
        %v1079 = vld [vmem:[%s403 + $0x18] sm:$0xf]
        %v1080 = vld [vmem:[%s403 + $0x1c] sm:$0xf]
        %v1081 = vld [vmem:[%s403 + $0x20] sm:$0xf]
        %v1082 = vld [vmem:[%s403 + $0x24] sm:$0xf]
        %v1083 = vld [vmem:[%s403 + $0x28] sm:$0xf]
        %v1084 = vld [vmem:[%s403 + $0x2c] sm:$0xf]
        %v1085 = vld [vmem:[%s403 + $0x30] sm:$0xf]
        %v1086 = vld [vmem:[%s403 + $0x34] sm:$0xf]
        %v1087 = vld [vmem:[%s403 + $0x38] sm:$0xf]
        %v1088 = vld [vmem:[%s403 + $0x3c] sm:$0xf]
        %v1089 = vld [vmem:[%s403 + $0x40] sm:$0xf]
        %v1090 = vld [vmem:[%s403 + $0x44] sm:$0xf]
        %v1091 = vld [vmem:[%s403 + $0x48] sm:$0xf]
        %v1092 = vld [vmem:[%s403 + $0x4c] sm:$0xf]
        %v1093 = vld [vmem:[%s403 + $0x50] sm:$0xf]
        %v1094 = vld [vmem:[%s403 + $0x54] sm:$0xf]
        %v1095 = vld [vmem:[%s403 + $0x58] sm:$0xf]
        %v1096 = vld [vmem:[%s403 + $0x5c] sm:$0xf]
        %v1097 = vld [vmem:[%s403 + $0x60] sm:$0xf]
        %v1098 = vld [vmem:[%s403 + $0x64] sm:$0xf]
        %v1099 = vld [vmem:[%s403 + $0x68] sm:$0xf]
        %v1100 = vld [vmem:[%s403 + $0x6c] sm:$0xf]
        %v1101 = vld [vmem:[%s403 + $0x70] sm:$0xf]
        %v1102 = vld [vmem:[%s403 + $0x74] sm:$0xf]
        %v1103 = vld [vmem:[%s403 + $0x78] sm:$0xf]
        %v1104 = vld [vmem:[%s403 + $0x7c] sm:$0xf]
        %v1105 = vld [vmem:[%s449] sm:$0x1]
        %v1107 = vlaneseq
        %v1108 = vshrl.u32 %v1107, 7
        %v1109 = vsub.s32 0, %v1108
        %v1110 = vrot.slane %v1105, %v1109
        %v1144 = vunpack.c.l.b16 %v1073
        %v1145 = vunpack.c.l.b16 %v1074
        %v1146 = vunpack.c.l.b16 %v1075
        %v1147 = vunpack.c.l.b16 %v1076
        %v1148 = vunpack.c.l.b16 %v1077
        %v1149 = vunpack.c.l.b16 %v1078
        %v1150 = vunpack.c.l.b16 %v1079
        %v1151 = vunpack.c.l.b16 %v1080
        %v1152 = vunpack.c.l.b16 %v1081
        %v1153 = vunpack.c.l.b16 %v1082
        %v1154 = vunpack.c.l.b16 %v1083
        %v1155 = vunpack.c.l.b16 %v1084
        %v1156 = vunpack.c.l.b16 %v1085
        %v1157 = vunpack.c.l.b16 %v1086
        %v1158 = vunpack.c.l.b16 %v1087
        %v1159 = vunpack.c.l.b16 %v1088
        %v1160 = vunpack.c.l.b16 %v1089
        %v1161 = vunpack.c.l.b16 %v1090
        %v1162 = vunpack.c.l.b16 %v1091
        %v1163 = vunpack.c.l.b16 %v1092
        %v1164 = vunpack.c.l.b16 %v1093
        %v1165 = vunpack.c.l.b16 %v1094
        %v1166 = vunpack.c.l.b16 %v1095
        %v1167 = vunpack.c.l.b16 %v1096
        %v1168 = vunpack.c.l.b16 %v1097
        %v1169 = vunpack.c.l.b16 %v1098
        %v1170 = vunpack.c.l.b16 %v1099
        %v1171 = vunpack.c.l.b16 %v1100
        %v1172 = vunpack.c.l.b16 %v1101
        %v1173 = vunpack.c.l.b16 %v1102
        %v1174 = vunpack.c.l.b16 %v1103
        %v1175 = vunpack.c.l.b16 %v1104
        %v1176 = vpack.c.b16 %v1145, %v1144
        %v1177 = vpack.c.b16 %v1147, %v1146
        %v1178 = vpack.c.b16 %v1149, %v1148
        %v1179 = vpack.c.b16 %v1151, %v1150
        %v1180 = vpack.c.b16 %v1153, %v1152
        %v1181 = vpack.c.b16 %v1155, %v1154
        %v1182 = vpack.c.b16 %v1157, %v1156
        %v1183 = vpack.c.b16 %v1159, %v1158
        %v1184 = vpack.c.b16 %v1161, %v1160
        %v1185 = vpack.c.b16 %v1163, %v1162
        %v1186 = vpack.c.b16 %v1165, %v1164
        %v1187 = vpack.c.b16 %v1167, %v1166
        %v1188 = vpack.c.b16 %v1169, %v1168
        %v1189 = vpack.c.b16 %v1171, %v1170
        %v1190 = vpack.c.b16 %v1173, %v1172
        %v1191 = vpack.c.b16 %v1175, %v1174
        %1208 = vmatprep.subr.bf16.mxu0 0
        %1209 = vmatpush1.bf16.msra.mxu0 %v1176
        %1210 = vmatprep.subr.bf16.mxu0 0
        %1211 = vmatpush1.bf16.msra.mxu0 %v1177
        %1212 = vmatprep.subr.bf16.mxu0 0
        %1213 = vmatpush1.bf16.msra.mxu0 %v1178
        %1214 = vmatprep.subr.bf16.mxu0 0
        %1215 = vmatpush1.bf16.msra.mxu0 %v1179
        %1216 = vmatprep.subr.bf16.mxu0 0
        %1217 = vmatpush1.bf16.msra.mxu0 %v1180
        %1218 = vmatprep.subr.bf16.mxu0 0
        %1219 = vmatpush1.bf16.msra.mxu0 %v1181
        %1220 = vmatprep.subr.bf16.mxu0 0
        %1221 = vmatpush1.bf16.msra.mxu0 %v1182
        %1222 = vmatprep.subr.bf16.mxu0 0
        %1223 = vmatpush1.bf16.msra.mxu0 %v1183
        %1224 = vmatprep.subr.bf16.mxu0 0
        %1225 = vmatpush1.bf16.msra.mxu0 %v1184
        %1226 = vmatprep.subr.bf16.mxu0 0
        %1227 = vmatpush1.bf16.msra.mxu0 %v1185
        %1228 = vmatprep.subr.bf16.mxu0 0
        %1229 = vmatpush1.bf16.msra.mxu0 %v1186
        %1230 = vmatprep.subr.bf16.mxu0 0
        %1231 = vmatpush1.bf16.msra.mxu0 %v1187
        %1232 = vmatprep.subr.bf16.mxu0 0
        %1233 = vmatpush1.bf16.msra.mxu0 %v1188
        %1234 = vmatprep.subr.bf16.mxu0 0
        %1235 = vmatpush1.bf16.msra.mxu0 %v1189
        %1236 = vmatprep.subr.bf16.mxu0 0
        %1237 = vmatpush1.bf16.msra.mxu0 %v1190
        %1238 = vmatprep.subr.bf16.mxu0 0
        %1239 = vmatpush1.bf16.msra.mxu0 %v1191
        %1240 = vmatprep.mubr.bf16.mxu0 %v1058
        %1241 = vmatmul.mubr.bf16.gmra.mrb[0].mxu0 %v1057
        %v1242 = vpop.f32.mrb[0].mxu0
        %v1243 = vadd.f32 %v1110, %v1242
        %v1244 = vpop.f32.mrb[0].mxu0
        %v1245 = vpop.f32.mrb[0].mxu0
        %v1246 = vadd.f32 %v1110, %v1245
        %v1247 = vpop.f32.mrb[0].mxu0
        %1248 = vmatprep.mubr.bf16.mxu0 %v1060
        %1249 = vmatmul.mubr.bf16.gmra.mrb[0].mxu0 %v1059
        %v1250 = vpop.f32.mrb[0].mxu0
        %v1251 = vadd.f32 %v1110, %v1250
        %v1252 = vpop.f32.mrb[0].mxu0
        %v1253 = vpop.f32.mrb[0].mxu0
        %v1254 = vadd.f32 %v1110, %v1253
        %v1255 = vpop.f32.mrb[0].mxu0
        %1256 = vmatprep.mubr.bf16.mxu0 %v1062
        %1257 = vmatmul.mubr.bf16.gmra.mrb[0].mxu0 %v1061
        %v1258 = vpop.f32.mrb[0].mxu0
        %v1259 = vadd.f32 %v1110, %v1258
        %v1260 = vpop.f32.mrb[0].mxu0
        %v1261 = vpop.f32.mrb[0].mxu0
        %v1262 = vadd.f32 %v1110, %v1261
        %v1263 = vpop.f32.mrb[0].mxu0
        %1264 = vmatprep.mubr.bf16.mxu0 %v1064
        %1265 = vmatmul.mubr.bf16.gmra.mrb[0].mxu0 %v1063
        %v1266 = vpop.f32.mrb[0].mxu0
        %v1267 = vadd.f32 %v1110, %v1266
        %v1268 = vpop.f32.mrb[0].mxu0
        %v1269 = vpop.f32.mrb[0].mxu0
        %v1270 = vadd.f32 %v1110, %v1269
        %v1271 = vpop.f32.mrb[0].mxu0
        %1272 = vmatprep.mubr.bf16.mxu0 %v1066
        %1273 = vmatmul.mubr.bf16.gmra.mrb[0].mxu0 %v1065
        %v1274 = vpop.f32.mrb[0].mxu0
        %v1275 = vadd.f32 %v1110, %v1274
        %v1276 = vpop.f32.mrb[0].mxu0
        %v1277 = vpop.f32.mrb[0].mxu0
        %v1278 = vadd.f32 %v1110, %v1277
        %v1279 = vpop.f32.mrb[0].mxu0
        %1280 = vmatprep.mubr.bf16.mxu0 %v1068
        %1281 = vmatmul.mubr.bf16.gmra.mrb[0].mxu0 %v1067
        %v1282 = vpop.f32.mrb[0].mxu0
        %v1283 = vadd.f32 %v1110, %v1282
        %v1284 = vpop.f32.mrb[0].mxu0
        %v1285 = vpop.f32.mrb[0].mxu0
        %v1286 = vadd.f32 %v1110, %v1285
        %v1287 = vpop.f32.mrb[0].mxu0
        %1288 = vmatprep.mubr.bf16.mxu0 %v1070
        %1289 = vmatmul.mubr.bf16.gmra.mrb[0].mxu0 %v1069
        %v1290 = vpop.f32.mrb[0].mxu0
        %v1291 = vadd.f32 %v1110, %v1290
        %v1292 = vpop.f32.mrb[0].mxu0
        %v1293 = vpop.f32.mrb[0].mxu0
        %v1294 = vadd.f32 %v1110, %v1293
        %v1295 = vpop.f32.mrb[0].mxu0
        %1296 = vmatprep.mubr.bf16.mxu0 %v1072
        %1297 = vmatmul.mubr.bf16.gmra.mrb[0].mxu0 %v1071
        %v1298 = vpop.f32.mrb[0].mxu0
        %v1299 = vadd.f32 %v1110, %v1298
        %v1300 = vpop.f32.mrb[0].mxu0
        %v1301 = vpop.f32.mrb[0].mxu0
        %v1302 = vadd.f32 %v1110, %v1301
        %v1303 = vpop.f32.mrb[0].mxu0
        %1304 = vdwg.mxu0
        %v1305 = vtanh.pop %v1243
        %v1306 = vtanh.pop %v1246
        %v1307 = vtanh.pop %v1251
        %v1308 = vtanh.pop %v1254
        %v1309 = vtanh.pop %v1259
        %v1310 = vtanh.pop %v1262
        %v1311 = vtanh.pop %v1267
        %v1312 = vtanh.pop %v1270
        %v1313 = vtanh.pop %v1275
        %v1314 = vtanh.pop %v1278
        %v1315 = vtanh.pop %v1283
        %v1316 = vtanh.pop %v1286
        %v1317 = vtanh.pop %v1291
        %v1318 = vtanh.pop %v1294
        %v1319 = vtanh.pop %v1299
        %v1320 = vtanh.pop %v1302
        %1321 = vst [vmem:[%s445] sm:$0xff] %v1305
        %1322 = vst [vmem:[%s445 + $0x8] sm:$0xff] %v1306
        %1323 = vst [vmem:[%s445 + $0x10] sm:$0xff] %v1307
        %1324 = vst [vmem:[%s445 + $0x18] sm:$0xff] %v1308
        %1325 = vst [vmem:[%s445 + $0x20] sm:$0xff] %v1309
        %1326 = vst [vmem:[%s445 + $0x28] sm:$0xff] %v1310
        %1327 = vst [vmem:[%s445 + $0x30] sm:$0xff] %v1311
        %1328 = vst [vmem:[%s445 + $0x38] sm:$0xff] %v1312
        %1329 = vst [vmem:[%s445 + $0x40] sm:$0xff] %v1313
        %1330 = vst [vmem:[%s445 + $0x48] sm:$0xff] %v1314
        %1331 = vst [vmem:[%s445 + $0x50] sm:$0xff] %v1315
        %1332 = vst [vmem:[%s445 + $0x58] sm:$0xff] %v1316
        %1333 = vst [vmem:[%s445 + $0x60] sm:$0xff] %v1317
        %1334 = vst [vmem:[%s445 + $0x68] sm:$0xff] %v1318
        %1335 = vst [vmem:[%s445 + $0x70] sm:$0xff] %v1319
        %1336 = vst [vmem:[%s445 + $0x78] sm:$0xff] %v1320
        %s1337 = sand.u32 %s258, 1
        %s1338 = scalar_lea.sflag [#allocation7], %s1337
        %s1339 = sand.u32 %s258, 1
        %s1340 = smul.addr %s1339, 128
        %s1341 = scalar_lea.vmem [#allocation13], %s1340
        // Predicated region
        $region77: #{tpu_custom_call.1} parent=55 // pred_check
          %p1342 = pneg %p268
        $region78: #{tpu_custom_call.1} parent=55 // pred_check_branch
          %1344 = sbr.rel (%p1342) target = $region80
        $region79: #{tpu_custom_call.1} parent=55 // pred_region
          %s1345 = smul.u32 16, %s36
          %s1347 = ssub.s32 2048, 2048
          %1348 = vsyncadd %s1338, %s1347
          %s1349 = smul.addr %s1345, 3
          %s1350 = sadd.s32 %s37, %s1349
          %s1351 = smul.addr %s1350, 128
          %s1352 = scalar_lea.hbm %s9, %s1351
          %s1353 = sshll.u32 %s1341, 4
          %s1354 = int_to_ptr.vmem [resolvable:$true] %s1353
          %1359 = dma.vmem_to_hbm [thread:$0]  %s1354, 2048, %s1352, %s1338, 128, 384, 8
        $region80: #{tpu_custom_call.1} parent=55 // pred_fallthru
          _
      $region56: #{tpu_custom_call.1} parent=5 // pred_fallthru
        _
      %p1360 = scmp.le.s32.totalorder 2, %s27
      // Predicated region
      $region81: #{tpu_custom_call.1} parent=5 // pred_check
        %p1361 = pneg %p1360
      $region82: #{tpu_custom_call.1} parent=5 // pred_check_branch
        %1363 = sbr.rel (%p1361) target = $region84
      $region83: #{tpu_custom_call.1} parent=5 // pred_region
        %s1364 = ssub.s32 %s27, 2
        // Predicated region
        $region85: #{tpu_custom_call.1} parent=83 // pred_check
          %p1365 = pneg %p274
        $region86: #{tpu_custom_call.1} parent=83 // pred_check_branch
          %1367 = sbr.rel (%p1365) target = $region88
        $region87: #{tpu_custom_call.1} parent=83 // pred_region
          %s1368 = sand.u32 %s259, 1
          %s1369 = scalar_lea.sflag [#allocation7], %s1368
          %s1370 = sand.u32 %s259, 1
          %s1371 = smul.addr %s1370, 128
          %s1372 = scalar_lea.vmem [#allocation13], %s1371
          %1373 = dma.done %s1369, 2048
        $region88: #{tpu_custom_call.1} parent=83 // pred_fallthru
          _
      $region84: #{tpu_custom_call.1} parent=5 // pred_fallthru
        _
    $region6: #{tpu_custom_call.1} parent=1 // loop_footer
      %s31 = sadd.s32 1, %s27
    $region7: #{tpu_custom_call.1} parent=1 // loop_footer_branch
      %26 = sbr.rel target = $region3
    $region8: #{tpu_custom_call.1} parent=1 // loop_exit
      _
    %1374 = vsyncpa [#allocation6], 1
    %s1375 = scalar_lea.sflag [#allocation6], 1
    %1376 = vsyncpa %s1375, 1
    %1377 = vsyncpa [#allocation9], 1
    %1378 = vsyncpa [#allocation12], 1
    %s1379 = scalar_lea.sflag [#allocation12], 1
    %1380 = vsyncpa %s1379, 1
    %1381 = vsyncpa [#allocation7], 1
    %s1382 = scalar_lea.sflag [#allocation7], 1
    %1383 = vsyncpa %s1382, 1

// kernel: tpu_custom_call.1
$region0: #{tpu_custom_call.1}
  #allocation0 [shape = 'u32[]', space=smem, size = 0x4, offset = 0x4, fixed_abs, tag = 'smem constant byte address 0x4 - core index']
  #allocation1 [shape = 'u32[144,128]{1,0:T(1,128)}', space=vmem, size = 0x12000, scoped, tag = 'internal scratch']
  #allocation2 [shape = 'bf16[128,256]{1,0:T(16,128)(2,1)}', space=vmem, size = 0x10000, scoped, tag = 'scratch operand']
  #allocation3 [shape = 'f32[1]{0:T(128)S(6)}', space=smem, size = 0x200, scoped, tag = 'scoped memory for tpu_custom_call.1']
  #allocation4 [shape = 'f32[1]{0:T(128)S(6)}', space=smem, size = 0x200, scoped, tag = 'scoped memory for tpu_custom_call.1']
  %s0 = inlined_call_operand.hbm [shape: f32[256,128], index: 0, kind: input, shape index: {}]
  %s1 = inlined_call_operand.hbm [shape: bf16[128,128], index: 1, kind: input, shape index: {}]
  %s2 = inlined_call_operand.vmem [shape: f32[1,128], index: 2, kind: input, shape index: {}]
  %s3 = inlined_call_operand.<no memory space> [shape: f32[1], index: 3, kind: input, shape index: {}]
  %s4 = inlined_call_operand.hbm [shape: bf16[128,256], index: 4, kind: input, shape index: {}]
  %s5 = inlined_call_operand.vmem [shape: f32[1,256], index: 5, kind: input, shape index: {}]
  %s6 = inlined_call_operand.<no memory space> [shape: f32[1], index: 6, kind: input, shape index: {}]
  %s7 = inlined_call_operand.hbm [shape: bf16[256,384], index: 7, kind: input, shape index: {}]
  %s8 = inlined_call_operand.vmem [shape: f32[1,384], index: 8, kind: input, shape index: {}]
  %s9 = inlined_call_operand.hbm [shape: f32[256,384], index: 9, kind: output, shape index: {}]
  %s10 = sld [smem:[#allocation0]]
  $region89: #{tpu_custom_call.1} parent=0
    _
  %s12 = ssub.s32 1, %s10
  %s13 = scalar_select 0, %s12, %s10
  %14 = sst [smem:[#allocation3]] %s3
  %15 = sst [smem:[#allocation4]] %s6
  $region1: #{tpu_custom_call.1} parent=0
    #allocation5 [shape = 'u8[131072]{0}', space=vmem, size = 0x20000, scoped, tag = 'input window, operand 0']
    #allocation6 [shape = 's32[2]{0}', space=sflag, size = 0x8, scoped, tag = 'scoped memory for tpu_custom_call.1']
    #allocation7 [shape = 's32[2]{0}', space=sflag, size = 0x8, scoped, tag = 'scoped memory for tpu_custom_call.1']
    #allocation8 [shape = 'u8[32768]{0}', space=vmem, size = 0x8000, scoped, tag = 'input window, operand 1, single buffered']
    #allocation9 [shape = 's32[1]{0}', space=sflag, size = 0x4, scoped, tag = 'scoped memory for tpu_custom_call.1']
    #allocation10 [shape = 'u8[65536]{0}', space=vmem, size = 0x10000, scoped, tag = 'input window, operand 4, single buffered']
    #allocation11 [shape = 'u8[131072]{0}', space=vmem, size = 0x20000, scoped, tag = 'input window, operand 7']
    #allocation12 [shape = 's32[2]{0}', space=sflag, size = 0x8, scoped, tag = 'scoped memory for tpu_custom_call.1']
    #allocation13 [shape = 'u8[131072]{0}', space=vmem, size = 0x20000, scoped, tag = 'output window, operand 0']
    %16 = vsyncpa [#allocation6], 0
    %s17 = scalar_lea.sflag [#allocation6], 1
    %18 = vsyncpa %s17, 0
    %19 = vsyncpa [#allocation9], 0
    %20 = vsyncpa [#allocation12], 0
    %s21 = scalar_lea.sflag [#allocation12], 1
    %22 = vsyncpa %s21, 0
    %23 = vsyncpa [#allocation7], 0
    %s24 = scalar_lea.sflag [#allocation7], 1
    %25 = vsyncpa %s24, 0
    loop: start=0, step=1, limit=8
    $region2: #{tpu_custom_call.1} parent=1 // loop_pre_header
      _
    $region3: #{tpu_custom_call.1} parent=1 // loop_header
      %s27 = sphi 0, %s31
      %p28 = scmp.ge.s32.totalorder %s27, 8
      %s34 = sphi 0, %s46
      %s35 = sphi 0, %s42
      %s36 = sphi 0, %s34
      %s37 = sphi 0, %s35
      %s38 = sphi 0, %s36
      %s39 = sphi 0, %s37
      %s49 = sphi 0, %s51
      %s52 = sphi 0, %s49
      %s53 = sphi 0, %s52
      %s69 = sphi 0, %s53
      %s73 = sphi 0, %s73
      %s75 = sphi 0, %s73
      %s76 = sphi 0, %s75
      %s90 = sphi 0, %s76
      %s94 = sphi 0, %s94
      %s96 = sphi 0, %s94
      %s97 = sphi 0, %s96
      %s111 = sphi 0, %s97
      %s115 = sphi 0, %s115
      %s117 = sphi 0, %s115
      %s118 = sphi 0, %s117
      %s132 = sphi 0, %s118
      %s136 = sphi 0, %s136
      %s138 = sphi 0, %s136
      %s139 = sphi 0, %s138
      %s153 = sphi 0, %s139
      %s157 = sphi 0, %s157
      %s159 = sphi 0, %s157
      %s160 = sphi 0, %s159
      %s174 = sphi 0, %s160
      %s178 = sphi 0, %s178
      %s180 = sphi 0, %s178
      %s181 = sphi 0, %s180
      %s195 = sphi 0, %s181
      %s201 = sphi 0, %s203
      %s204 = sphi 0, %s201
      %s205 = sphi 0, %s204
      %s221 = sphi 0, %s205
      %s227 = sphi 0, %s229
      %s230 = sphi 0, %s227
      %s231 = sphi 0, %s230
      %s247 = sphi 0, %s231
      %s255 = sphi 0, %s257
      %s258 = sphi 0, %s255
      %s259 = sphi 0, %s258
      %s275 = sphi 0, %s259
    $region4: #{tpu_custom_call.1} parent=1 // loop_header_branch
      %30 = sbr.rel (%p28) target = $region8
    $region5: #{tpu_custom_call.1} parent=1 // loop_body
      %s32 = ssub.s32 %s27, 1
      %s33 = ssub.s32 %s27, 2
      %s40 = sadd.s32 1, %s35
      %p41 = scmp.ge.s32.totalorder %s40, 3
      %s42 = scalar_select %p41, 0, %s40
      %s43 = sadd.s32 1, %s34
      %s44 = scalar_select %p41, %s43, %s34
      %p45 = scmp.ge.s32.totalorder %s44, 2
      %s46 = scalar_select %p45, 0, %s44
      %s47 = ssub.s32 %s34, %s46
      %p48 = scmp.eq.s32.totalorder %s47, 0
      %s50 = sadd.s32 %s49, 1
      %s51 = scalar_select %p48, %s49, %s50
      %p54 = pneg %p48
      %p55 = scmp.eq.s32.totalorder %s27, 5
      %p56 = por %p54, %p55
      %p57 = scmp.ne.s32.totalorder %s49, %s52
      %p58 = scmp.eq.s32.totalorder %s27, 0
      %p59 = por %p57, %p58
      %p60 = scmp.ne.s32.totalorder %s49, %s52
      %p61 = scmp.eq.s32.totalorder %s32, 5
      %p62 = por %p60, %p61
      %p63 = scmp.ne.s32.totalorder %s52, %s53
      %p64 = scmp.eq.s32.totalorder %s32, 0
      %p65 = por %p63, %p64
      %p66 = scmp.ne.s32.totalorder %s52, %s53
      %p67 = scmp.eq.s32.totalorder %s33, 5
      %p68 = por %p66, %p67
      %p70 = scmp.ne.s32.totalorder %s53, %s69
      %p71 = scmp.eq.s32.totalorder %s33, 0
      %p72 = por %p70, %p71
      %s74 = sadd.s32 %s73, 1
      %p77 = scmp.eq.s32.totalorder %s27, 5
      %p78 = scmp.ne.s32.totalorder %s73, %s75
      %p79 = scmp.eq.s32.totalorder %s27, 0
      %p80 = por %p78, %p79
      %p81 = scmp.ne.s32.totalorder %s73, %s75
      %p82 = scmp.eq.s32.totalorder %s32, 5
      %p83 = por %p81, %p82
      %p84 = scmp.ne.s32.totalorder %s75, %s76
      %p85 = scmp.eq.s32.totalorder %s32, 0
      %p86 = por %p84, %p85
      %p87 = scmp.ne.s32.totalorder %s75, %s76
      %p88 = scmp.eq.s32.totalorder %s33, 5
      %p89 = por %p87, %p88
      %p91 = scmp.ne.s32.totalorder %s76, %s90
      %p92 = scmp.eq.s32.totalorder %s33, 0
      %p93 = por %p91, %p92
      %s95 = sadd.s32 %s94, 1
      %p98 = scmp.eq.s32.totalorder %s27, 5
      %p99 = scmp.ne.s32.totalorder %s94, %s96
      %p100 = scmp.eq.s32.totalorder %s27, 0
      %p101 = por %p99, %p100
      %p102 = scmp.ne.s32.totalorder %s94, %s96
      %p103 = scmp.eq.s32.totalorder %s32, 5
      %p104 = por %p102, %p103
      %p105 = scmp.ne.s32.totalorder %s96, %s97
      %p106 = scmp.eq.s32.totalorder %s32, 0
      %p107 = por %p105, %p106
      %p108 = scmp.ne.s32.totalorder %s96, %s97
      %p109 = scmp.eq.s32.totalorder %s33, 5
      %p110 = por %p108, %p109
      %p112 = scmp.ne.s32.totalorder %s97, %s111
      %p113 = scmp.eq.s32.totalorder %s33, 0
      %p114 = por %p112, %p113
      %s116 = sadd.s32 %s115, 1
      %p119 = scmp.eq.s32.totalorder %s27, 5
      %p120 = scmp.ne.s32.totalorder %s115, %s117
      %p121 = scmp.eq.s32.totalorder %s27, 0
      %p122 = por %p120, %p121
      %p123 = scmp.ne.s32.totalorder %s115, %s117
      %p124 = scmp.eq.s32.totalorder %s32, 5
      %p125 = por %p123, %p124
      %p126 = scmp.ne.s32.totalorder %s117, %s118
      %p127 = scmp.eq.s32.totalorder %s32, 0
      %p128 = por %p126, %p127
      %p129 = scmp.ne.s32.totalorder %s117, %s118
      %p130 = scmp.eq.s32.totalorder %s33, 5
      %p131 = por %p129, %p130
      %p133 = scmp.ne.s32.totalorder %s118, %s132
      %p134 = scmp.eq.s32.totalorder %s33, 0
      %p135 = por %p133, %p134
      %s137 = sadd.s32 %s136, 1
      %p140 = scmp.eq.s32.totalorder %s27, 5
      %p141 = scmp.ne.s32.totalorder %s136, %s138
      %p142 = scmp.eq.s32.totalorder %s27, 0
      %p143 = por %p141, %p142
      %p144 = scmp.ne.s32.totalorder %s136, %s138
      %p145 = scmp.eq.s32.totalorder %s32, 5
      %p146 = por %p144, %p145
      %p147 = scmp.ne.s32.totalorder %s138, %s139
      %p148 = scmp.eq.s32.totalorder %s32, 0
      %p149 = por %p147, %p148
      %p150 = scmp.ne.s32.totalorder %s138, %s139
      %p151 = scmp.eq.s32.totalorder %s33, 5
      %p152 = por %p150, %p151
      %p154 = scmp.ne.s32.totalorder %s139, %s153
      %p155 = scmp.eq.s32.totalorder %s33, 0
      %p156 = por %p154, %p155
      %s158 = sadd.s32 %s157, 1
      %p161 = scmp.eq.s32.totalorder %s27, 5
      %p162 = scmp.ne.s32.totalorder %s157, %s159
      %p163 = scmp.eq.s32.totalorder %s27, 0
      %p164 = por %p162, %p163
      %p165 = scmp.ne.s32.totalorder %s157, %s159
      %p166 = scmp.eq.s32.totalorder %s32, 5
      %p167 = por %p165, %p166
      %p168 = scmp.ne.s32.totalorder %s159, %s160
      %p169 = scmp.eq.s32.totalorder %s32, 0
      %p170 = por %p168, %p169
      %p171 = scmp.ne.s32.totalorder %s159, %s160
      %p172 = scmp.eq.s32.totalorder %s33, 5
      %p173 = por %p171, %p172
      %p175 = scmp.ne.s32.totalorder %s160, %s174
      %p176 = scmp.eq.s32.totalorder %s33, 0
      %p177 = por %p175, %p176
      %s179 = sadd.s32 %s178, 1
      %p182 = scmp.eq.s32.totalorder %s27, 5
      %p183 = scmp.ne.s32.totalorder %s178, %s180
      %p184 = scmp.eq.s32.totalorder %s27, 0
      %p185 = por %p183, %p184
      %p186 = scmp.ne.s32.totalorder %s178, %s180
      %p187 = scmp.eq.s32.totalorder %s32, 5
      %p188 = por %p186, %p187
      %p189 = scmp.ne.s32.totalorder %s180, %s181
      %p190 = scmp.eq.s32.totalorder %s32, 0
      %p191 = por %p189, %p190
      %p192 = scmp.ne.s32.totalorder %s180, %s181
      %p193 = scmp.eq.s32.totalorder %s33, 5
      %p194 = por %p192, %p193
      %p196 = scmp.ne.s32.totalorder %s181, %s195
      %p197 = scmp.eq.s32.totalorder %s33, 0
      %p198 = por %p196, %p197
      %s199 = ssub.s32 %s35, %s42
      %p200 = scmp.eq.s32.totalorder %s199, 0
      %s202 = sadd.s32 %s201, 1
      %s203 = scalar_select %p200, %s201, %s202
      %p206 = pneg %p200
      %p207 = scmp.eq.s32.totalorder %s27, 5
      %p208 = por %p206, %p207
      %p209 = scmp.ne.s32.totalorder %s201, %s204
      %p210 = scmp.eq.s32.totalorder %s27, 0
      %p211 = por %p209, %p210
      %p212 = scmp.ne.s32.totalorder %s201, %s204
      %p213 = scmp.eq.s32.totalorder %s32, 5
      %p214 = por %p212, %p213
      %p215 = scmp.ne.s32.totalorder %s204, %s205
      %p216 = scmp.eq.s32.totalorder %s32, 0
      %p217 = por %p215, %p216
      %p218 = scmp.ne.s32.totalorder %s204, %s205
      %p219 = scmp.eq.s32.totalorder %s33, 5
      %p220 = por %p218, %p219
      %p222 = scmp.ne.s32.totalorder %s205, %s221
      %p223 = scmp.eq.s32.totalorder %s33, 0
      %p224 = por %p222, %p223
      %s225 = ssub.s32 %s35, %s42
      %p226 = scmp.eq.s32.totalorder %s225, 0
      %s228 = sadd.s32 %s227, 1
      %s229 = scalar_select %p226, %s227, %s228
      %p232 = pneg %p226
      %p233 = scmp.eq.s32.totalorder %s27, 5
      %p234 = por %p232, %p233
      %p235 = scmp.ne.s32.totalorder %s227, %s230
      %p236 = scmp.eq.s32.totalorder %s27, 0
      %p237 = por %p235, %p236
      %p238 = scmp.ne.s32.totalorder %s227, %s230
      %p239 = scmp.eq.s32.totalorder %s32, 5
      %p240 = por %p238, %p239
      %p241 = scmp.ne.s32.totalorder %s230, %s231
      %p242 = scmp.eq.s32.totalorder %s32, 0
      %p243 = por %p241, %p242
      %p244 = scmp.ne.s32.totalorder %s230, %s231
      %p245 = scmp.eq.s32.totalorder %s33, 5
      %p246 = por %p244, %p245
      %p248 = scmp.ne.s32.totalorder %s231, %s247
      %p249 = scmp.eq.s32.totalorder %s33, 0
      %p250 = por %p248, %p249
      %s251 = ssub.s32 %s34, %s46
      %s252 = ssub.s32 %s35, %s42
      %s253 = sor.u32 %s251, %s252
      %p254 = scmp.eq.s32.totalorder %s253, 0
      %s256 = sadd.s32 %s255, 1
      %s257 = scalar_select %p254, %s255, %s256
      %p260 = pneg %p254
      %p261 = scmp.eq.s32.totalorder %s27, 5
      %p262 = por %p260, %p261
      %p263 = scmp.ne.s32.totalorder %s255, %s258
      %p264 = scmp.eq.s32.totalorder %s27, 0
      %p265 = por %p263, %p264
      %p266 = scmp.ne.s32.totalorder %s255, %s258
      %p267 = scmp.eq.s32.totalorder %s32, 5
      %p268 = por %p266, %p267
      %p269 = scmp.ne.s32.totalorder %s258, %s259
      %p270 = scmp.eq.s32.totalorder %s32, 0
      %p271 = por %p269, %p270
      %p272 = scmp.ne.s32.totalorder %s258, %s259
      %p273 = scmp.eq.s32.totalorder %s33, 5
      %p274 = por %p272, %p273
      %p276 = scmp.ne.s32.totalorder %s259, %s275
      %p277 = scmp.eq.s32.totalorder %s33, 0
      %p278 = por %p276, %p277
      %p279 = scmp.le.s32.totalorder 1, %s27
      %p280 = scmp.lt.s32.totalorder %s27, 7
      %p281 = pnand %p279, %p280
      %p282 = pneg %p281
      // Predicated region
      $region9: #{tpu_custom_call.1} parent=5 // pred_check
        _
      $region10: #{tpu_custom_call.1} parent=5 // pred_check_branch
        %284 = sbr.rel (%p281) target = $region12
      $region11: #{tpu_custom_call.1} parent=5 // pred_region
        %s285 = ssub.s32 %s27, 1
        // Predicated region
        $region13: #{tpu_custom_call.1} parent=11 // pred_check
          %p286 = pneg %p86
        $region14: #{tpu_custom_call.1} parent=11 // pred_check_branch
          %288 = sbr.rel (%p286) target = $region16
        $region15: #{tpu_custom_call.1} parent=11 // pred_region
          %s290 = ssub.s32 1024, 1024
          %291 = vsyncadd [#allocation9], %s290
          %s292 = sshll.u32 [#allocation8], 4
          %s293 = int_to_ptr.vmem [resolvable:$true] %s292
          %298 = dma.hbm_to_vmem [thread:$0]  %s1, 1024, %s293, [#allocation9], 64, 64, 4
        $region16: #{tpu_custom_call.1} parent=11 // pred_fallthru
          _
        // Predicated region
        $region17: #{tpu_custom_call.1} parent=11 // pred_check
          %p299 = pneg %p107
        $region18: #{tpu_custom_call.1} parent=11 // pred_check_branch
          %301 = sbr.rel (%p299) target = $region20
        $region19: #{tpu_custom_call.1} parent=11 // pred_region
          _
        $region20: #{tpu_custom_call.1} parent=11 // pred_fallthru
          _
        // Predicated region
        $region21: #{tpu_custom_call.1} parent=11 // pred_check
          %p302 = pneg %p128
        $region22: #{tpu_custom_call.1} parent=11 // pred_check_branch
          %304 = sbr.rel (%p302) target = $region24
        $region23: #{tpu_custom_call.1} parent=11 // pred_region
          _
        $region24: #{tpu_custom_call.1} parent=11 // pred_fallthru
          _
        // Predicated region
        $region25: #{tpu_custom_call.1} parent=11 // pred_check
          %p305 = pneg %p149
        $region26: #{tpu_custom_call.1} parent=11 // pred_check_branch
          %307 = sbr.rel (%p305) target = $region28
        $region27: #{tpu_custom_call.1} parent=11 // pred_region
          %s309 = ssub.s32 2048, 2048
          %310 = vsyncadd [#allocation9], %s309
          %s311 = sshll.u32 [#allocation10], 4
          %s312 = int_to_ptr.vmem [resolvable:$true] %s311
          %317 = dma.hbm_to_vmem [thread:$0]  %s4, 2048, %s312, [#allocation9], 128, 128, 8
        $region28: #{tpu_custom_call.1} parent=11 // pred_fallthru
          _
        // Predicated region
        $region29: #{tpu_custom_call.1} parent=11 // pred_check
          %p318 = pneg %p170
        $region30: #{tpu_custom_call.1} parent=11 // pred_check_branch
          %320 = sbr.rel (%p318) target = $region32
        $region31: #{tpu_custom_call.1} parent=11 // pred_region
          _
        $region32: #{tpu_custom_call.1} parent=11 // pred_fallthru
          _
        // Predicated region
        $region33: #{tpu_custom_call.1} parent=11 // pred_check
          %p321 = pneg %p191
        $region34: #{tpu_custom_call.1} parent=11 // pred_check_branch
          %323 = sbr.rel (%p321) target = $region36
        $region35: #{tpu_custom_call.1} parent=11 // pred_region
          _
        $region36: #{tpu_custom_call.1} parent=11 // pred_fallthru
          _
      $region12: #{tpu_custom_call.1} parent=5 // pred_fallthru
        _
      %p324 = scmp.lt.s32.totalorder %s27, 6
      // Predicated region
      $region37: #{tpu_custom_call.1} parent=5 // pred_check
        %p325 = pneg %p324
      $region38: #{tpu_custom_call.1} parent=5 // pred_check_branch
        %327 = sbr.rel (%p325) target = $region40
      $region39: #{tpu_custom_call.1} parent=5 // pred_region
        // Predicated region
        $region41: #{tpu_custom_call.1} parent=39 // pred_check
          %p328 = pneg %p59
        $region42: #{tpu_custom_call.1} parent=39 // pred_check_branch
          %330 = sbr.rel (%p328) target = $region44
        $region43: #{tpu_custom_call.1} parent=39 // pred_region
          %s331 = sand.u32 %s49, 1
          %s332 = scalar_lea.sflag [#allocation6], %s331
          %s333 = sand.u32 %s49, 1
          %s334 = smul.addr %s333, 128
          %s335 = scalar_lea.vmem [#allocation5], %s334
          %s336 = smul.u32 16, %s34
          %s338 = ssub.s32 2048, 2048
          %339 = vsyncadd %s332, %s338
          %s340 = smul.addr %s336, 128
          %s341 = scalar_lea.hbm %s0, %s340
          %s342 = sshll.u32 %s335, 4
          %s343 = int_to_ptr.vmem [resolvable:$true] %s342
          %348 = dma.hbm_to_vmem [thread:$0]  %s341, 2048, %s343, %s332, 128, 128, 8
        $region44: #{tpu_custom_call.1} parent=39 // pred_fallthru
          _
        // Predicated region
        $region45: #{tpu_custom_call.1} parent=39 // pred_check
          %p349 = pneg %p211
        $region46: #{tpu_custom_call.1} parent=39 // pred_check_branch
          %351 = sbr.rel (%p349) target = $region48
        $region47: #{tpu_custom_call.1} parent=39 // pred_region
          %s352 = sand.u32 %s201, 1
          %s353 = scalar_lea.sflag [#allocation12], %s352
          %s354 = sand.u32 %s201, 1
          %s355 = smul.addr %s354, 128
          %s356 = scalar_lea.vmem [#allocation11], %s355
          %s358 = ssub.s32 2048, 2048
          %359 = vsyncadd %s353, %s358
          %s360 = smul.addr %s35, 64
          %s361 = scalar_lea.hbm %s7, %s360
          %s362 = sshll.u32 %s356, 4
          %s363 = int_to_ptr.vmem [resolvable:$true] %s362
          %368 = dma.hbm_to_vmem [thread:$0]  %s361, 2048, %s363, %s353, 192, 64, 4
        $region48: #{tpu_custom_call.1} parent=39 // pred_fallthru
          _
        // Predicated region
        $region49: #{tpu_custom_call.1} parent=39 // pred_check
          %p369 = pneg %p237
        $region50: #{tpu_custom_call.1} parent=39 // pred_check_branch
          %371 = sbr.rel (%p369) target = $region52
        $region51: #{tpu_custom_call.1} parent=39 // pred_region
          %p372 = scmp.lt.s32.totalorder %s35, 2
          %s373 = scalar_select %p372, %s35, 2
          %s374 = scalar_lea.vmem %s8, %s373
        $region52: #{tpu_custom_call.1} parent=39 // pred_fallthru
          _
      $region40: #{tpu_custom_call.1} parent=5 // pred_fallthru
        _
      %p375 = scmp.le.s32.totalorder 1, %s27
      %p376 = scmp.lt.s32.totalorder %s27, 7
      %p377 = pnand %p375, %p376
      %p378 = pneg %p377
      // Predicated region
      $region53: #{tpu_custom_call.1} parent=5 // pred_check
        _
      $region54: #{tpu_custom_call.1} parent=5 // pred_check_branch
        %380 = sbr.rel (%p377) target = $region56
      $region55: #{tpu_custom_call.1} parent=5 // pred_region
        %s381 = ssub.s32 %s27, 1
        %s382 = sand.u32 %s52, 1
        %s383 = scalar_lea.sflag [#allocation6], %s382
        %s384 = sand.u32 %s52, 1
        %s385 = smul.addr %s384, 128
        %s386 = scalar_lea.vmem [#allocation5], %s385
        // Predicated region
        $region57: #{tpu_custom_call.1} parent=55 // pred_check
          %p387 = pneg %p65
        $region58: #{tpu_custom_call.1} parent=55 // pred_check_branch
          %389 = sbr.rel (%p387) target = $region60
        $region59: #{tpu_custom_call.1} parent=55 // pred_region
          %390 = dma.done %s383, 2048
        $region60: #{tpu_custom_call.1} parent=55 // pred_fallthru
          _
        // Predicated region
        $region61: #{tpu_custom_call.1} parent=55 // pred_check
          %p391 = pneg %p86
        $region62: #{tpu_custom_call.1} parent=55 // pred_check_branch
          %393 = sbr.rel (%p391) target = $region64
        $region63: #{tpu_custom_call.1} parent=55 // pred_region
          %394 = dma.done [#allocation9], 1024
        $region64: #{tpu_custom_call.1} parent=55 // pred_fallthru
          _
        // Predicated region
        $region65: #{tpu_custom_call.1} parent=55 // pred_check
          %p395 = pneg %p149
        $region66: #{tpu_custom_call.1} parent=55 // pred_check_branch
          %397 = sbr.rel (%p395) target = $region68
        $region67: #{tpu_custom_call.1} parent=55 // pred_region
          %398 = dma.done [#allocation9], 2048
        $region68: #{tpu_custom_call.1} parent=55 // pred_fallthru
          _
        %s399 = sand.u32 %s204, 1
        %s400 = scalar_lea.sflag [#allocation12], %s399
        %s401 = sand.u32 %s204, 1
        %s402 = smul.addr %s401, 128
        %s403 = scalar_lea.vmem [#allocation11], %s402
        // Predicated region
        $region69: #{tpu_custom_call.1} parent=55 // pred_check
          %p404 = pneg %p217
        $region70: #{tpu_custom_call.1} parent=55 // pred_check_branch
          %406 = sbr.rel (%p404) target = $region72
        $region71: #{tpu_custom_call.1} parent=55 // pred_region
          %407 = dma.done %s400, 2048
        $region72: #{tpu_custom_call.1} parent=55 // pred_fallthru
          _
        %s408 = sand.u32 %s52, 1
        %s409 = scalar_lea.sflag [#allocation6], %s408
        %s410 = sand.u32 %s52, 1
        %s411 = smul.addr %s410, 128
        %s412 = scalar_lea.vmem [#allocation5], %s411
        %p413 = pneg %p65
        %p414 = pneg %p62
        %p415 = pneg %p86
        %p416 = pneg %p83
        %p417 = pneg %p107
        %p418 = pneg %p104
        %p419 = pneg %p128
        %p420 = pneg %p125
        %p421 = pneg %p149
        %p422 = pneg %p146
        %p423 = pneg %p170
        %p424 = pneg %p167
        %p425 = pneg %p191
        %p426 = pneg %p188
        %s427 = sand.u32 %s204, 1
        %s428 = scalar_lea.sflag [#allocation12], %s427
        %s429 = sand.u32 %s204, 1
        %s430 = smul.addr %s429, 128
        %s431 = scalar_lea.vmem [#allocation11], %s430
        %p432 = pneg %p217
        %p433 = pneg %p214
        %p434 = scmp.lt.s32.totalorder %s37, 2
        %s435 = scalar_select %p434, %s37, 2
        %s436 = scalar_lea.vmem %s8, %s435
        %p437 = pneg %p243
        %p438 = pneg %p240
        %p439 = pneg %p271
        %p440 = pneg %p268
        %s441 = sand.u32 %s258, 1
        %s442 = scalar_lea.sflag [#allocation7], %s441
        %s443 = sand.u32 %s258, 1
        %s444 = smul.addr %s443, 128
        %s445 = scalar_lea.vmem [#allocation13], %s444
        %s446 = smul.u32 16, %s36
        %p447 = scmp.lt.s32.totalorder %s37, 2
        %s448 = scalar_select %p447, %s37, 2
        %s449 = scalar_lea.vmem %s8, %s448
        %s450 = smul.u32 16, %s36
        %p452 = scmp.eq.s32.totalorder %s37, 0
        // Predicated region
        $region73: #{tpu_custom_call.1} parent=55 // pred_check
          %p453 = pneg %p452
        $region74: #{tpu_custom_call.1} parent=55 // pred_check_branch
          %455 = sbr.rel (%p453) target = $region76
        $region75: #{tpu_custom_call.1} parent=55 // pred_region
          %v456 = vld [vmem:[%s386] sm:$0xff]
          %v457 = vld [vmem:[%s386 + $0x8] sm:$0xff]
          %v458 = vld [vmem:[%s386 + $0x10] sm:$0xff]
          %v459 = vld [vmem:[%s386 + $0x18] sm:$0xff]
          %v460 = vld [vmem:[%s386 + $0x20] sm:$0xff]
          %v461 = vld [vmem:[%s386 + $0x28] sm:$0xff]
          %v462 = vld [vmem:[%s386 + $0x30] sm:$0xff]
          %v463 = vld [vmem:[%s386 + $0x38] sm:$0xff]
          %v464 = vld [vmem:[%s386 + $0x40] sm:$0xff]
          %v465 = vld [vmem:[%s386 + $0x48] sm:$0xff]
          %v466 = vld [vmem:[%s386 + $0x50] sm:$0xff]
          %v467 = vld [vmem:[%s386 + $0x58] sm:$0xff]
          %v468 = vld [vmem:[%s386 + $0x60] sm:$0xff]
          %v469 = vld [vmem:[%s386 + $0x68] sm:$0xff]
          %v470 = vld [vmem:[%s386 + $0x70] sm:$0xff]
          %v471 = vld [vmem:[%s386 + $0x78] sm:$0xff]
          %v472 = vpack.c.bf16 %v457, %v456
          %v473 = vpack.c.bf16 %v459, %v458
          %v474 = vpack.c.bf16 %v461, %v460
          %v475 = vpack.c.bf16 %v463, %v462
          %v476 = vpack.c.bf16 %v465, %v464
          %v477 = vpack.c.bf16 %v467, %v466
          %v478 = vpack.c.bf16 %v469, %v468
          %v479 = vpack.c.bf16 %v471, %v470
          %s480 = sld [smem:[#allocation3]]
          %s481 = sld [smem:[#allocation4]]
          %v482 = vld [vmem:[#allocation8] sm:$0xf]
          %v483 = vld [vmem:[#allocation8 + $0x4] sm:$0xf]
          %v484 = vld [vmem:[#allocation8 + $0x8] sm:$0xf]
          %v485 = vld [vmem:[#allocation8 + $0xc] sm:$0xf]
          %v486 = vld [vmem:[#allocation8 + $0x10] sm:$0xf]
          %v487 = vld [vmem:[#allocation8 + $0x14] sm:$0xf]
          %v488 = vld [vmem:[#allocation8 + $0x18] sm:$0xf]
          %v489 = vld [vmem:[#allocation8 + $0x1c] sm:$0xf]
          %v490 = vld [vmem:[#allocation8 + $0x20] sm:$0xf]
          %v491 = vld [vmem:[#allocation8 + $0x24] sm:$0xf]
          %v492 = vld [vmem:[#allocation8 + $0x28] sm:$0xf]
          %v493 = vld [vmem:[#allocation8 + $0x2c] sm:$0xf]
          %v494 = vld [vmem:[#allocation8 + $0x30] sm:$0xf]
          %v495 = vld [vmem:[#allocation8 + $0x34] sm:$0xf]
          %v496 = vld [vmem:[#allocation8 + $0x38] sm:$0xf]
          %v497 = vld [vmem:[#allocation8 + $0x3c] sm:$0xf]
          %v498 = vld [vmem:[%s2] sm:$0x1]
          %v500 = vlaneseq
          %v501 = vshrl.u32 %v500, 7
          %v502 = vsub.s32 0, %v501
          %v503 = vrot.slane %v498, %v502
          %v521 = vunpack.c.l.b16 %v482
          %v522 = vunpack.c.l.b16 %v483
          %v523 = vunpack.c.l.b16 %v484
          %v524 = vunpack.c.l.b16 %v485
          %v525 = vunpack.c.l.b16 %v486
          %v526 = vunpack.c.l.b16 %v487
          %v527 = vunpack.c.l.b16 %v488
          %v528 = vunpack.c.l.b16 %v489
          %v529 = vunpack.c.l.b16 %v490
          %v530 = vunpack.c.l.b16 %v491
          %v531 = vunpack.c.l.b16 %v492
          %v532 = vunpack.c.l.b16 %v493
          %v533 = vunpack.c.l.b16 %v494
          %v534 = vunpack.c.l.b16 %v495
          %v535 = vunpack.c.l.b16 %v496
          %v536 = vunpack.c.l.b16 %v497
          %v537 = vpack.c.b16 %v522, %v521
          %v538 = vpack.c.b16 %v524, %v523
          %v539 = vpack.c.b16 %v526, %v525
          %v540 = vpack.c.b16 %v528, %v527
          %v541 = vpack.c.b16 %v530, %v529
          %v542 = vpack.c.b16 %v532, %v531
          %v543 = vpack.c.b16 %v534, %v533
          %v544 = vpack.c.b16 %v536, %v535
          %553 = vmatprep.subr.bf16.mxu0 0
          %554 = vmatpush1.bf16.msra.mxu0 %v537
          %555 = vmatprep.subr.bf16.mxu0 0
          %556 = vmatpush1.bf16.msra.mxu0 %v538
          %557 = vmatprep.subr.bf16.mxu0 0
          %558 = vmatpush1.bf16.msra.mxu0 %v539
          %559 = vmatprep.subr.bf16.mxu0 0
          %560 = vmatpush1.bf16.msra.mxu0 %v540
          %561 = vmatprep.subr.bf16.mxu0 0
          %562 = vmatpush1.bf16.msra.mxu0 %v541
          %563 = vmatprep.subr.bf16.mxu0 0
          %564 = vmatpush1.bf16.msra.mxu0 %v542
          %565 = vmatprep.subr.bf16.mxu0 0
          %566 = vmatpush1.bf16.msra.mxu0 %v543
          %567 = vmatprep.subr.bf16.mxu0 0
          %568 = vmatpush1.bf16.msra.mxu0 %v544
          %569 = vmatprep.subr.bf16.mxu0 0
          %570 = vmatpush1.bf16.msra.mxu0 0
          %571 = vmatprep.subr.bf16.mxu0 0
          %572 = vmatpush1.bf16.msra.mxu0 0
          %573 = vmatprep.subr.bf16.mxu0 0
          %574 = vmatpush1.bf16.msra.mxu0 0
          %575 = vmatprep.subr.bf16.mxu0 0
          %576 = vmatpush1.bf16.msra.mxu0 0
          %577 = vmatprep.subr.bf16.mxu0 0
          %578 = vmatpush1.bf16.msra.mxu0 0
          %579 = vmatprep.subr.bf16.mxu0 0
          %580 = vmatpush1.bf16.msra.mxu0 0
          %581 = vmatprep.subr.bf16.mxu0 0
          %582 = vmatpush1.bf16.msra.mxu0 0
          %583 = vmatprep.subr.bf16.mxu0 0
          %584 = vmatpush1.bf16.msra.mxu0 0
          %585 = vmatprep.mubr.bf16.mxu0 0
          %586 = vmatmul.mubr.bf16.gmra.mrb[0].mxu0 %v472
          %v587 = vpop.f32.mrb[0].mxu0
          %v588 = vadd.f32 %v503, %v587
          %v589 = vpop.f32.mrb[0].mxu0
          %v590 = vpop.f32.mrb[0].mxu0
          %v591 = vadd.f32 %v503, %v590
          %v592 = vpop.f32.mrb[0].mxu0
          %593 = vmatprep.mubr.bf16.mxu0 0
          %594 = vmatmul.mubr.bf16.gmra.mrb[0].mxu0 %v473
          %v595 = vpop.f32.mrb[0].mxu0
          %v596 = vadd.f32 %v503, %v595
          %v597 = vpop.f32.mrb[0].mxu0
          %v598 = vpop.f32.mrb[0].mxu0
          %v599 = vadd.f32 %v503, %v598
          %v600 = vpop.f32.mrb[0].mxu0
          %601 = vmatprep.mubr.bf16.mxu0 0
          %602 = vmatmul.mubr.bf16.gmra.mrb[0].mxu0 %v474
          %v603 = vpop.f32.mrb[0].mxu0
          %v604 = vadd.f32 %v503, %v603
          %v605 = vpop.f32.mrb[0].mxu0
          %v606 = vpop.f32.mrb[0].mxu0
          %v607 = vadd.f32 %v503, %v606
          %v608 = vpop.f32.mrb[0].mxu0
          %609 = vmatprep.mubr.bf16.mxu0 0
          %610 = vmatmul.mubr.bf16.gmra.mrb[0].mxu0 %v475
          %v611 = vpop.f32.mrb[0].mxu0
          %v612 = vadd.f32 %v503, %v611
          %v613 = vpop.f32.mrb[0].mxu0
          %v614 = vpop.f32.mrb[0].mxu0
          %v615 = vadd.f32 %v503, %v614
          %v616 = vpop.f32.mrb[0].mxu0
          %617 = vmatprep.mubr.bf16.mxu0 0
          %618 = vmatmul.mubr.bf16.gmra.mrb[0].mxu0 %v476
          %v619 = vpop.f32.mrb[0].mxu0
          %v620 = vadd.f32 %v503, %v619
          %v621 = vpop.f32.mrb[0].mxu0
          %v622 = vpop.f32.mrb[0].mxu0
          %v623 = vadd.f32 %v503, %v622
          %v624 = vpop.f32.mrb[0].mxu0
          %625 = vmatprep.mubr.bf16.mxu0 0
          %626 = vmatmul.mubr.bf16.gmra.mrb[0].mxu0 %v477
          %v627 = vpop.f32.mrb[0].mxu0
          %v628 = vadd.f32 %v503, %v627
          %v629 = vpop.f32.mrb[0].mxu0
          %v630 = vpop.f32.mrb[0].mxu0
          %v631 = vadd.f32 %v503, %v630
          %v632 = vpop.f32.mrb[0].mxu0
          %633 = vmatprep.mubr.bf16.mxu0 0
          %634 = vmatmul.mubr.bf16.gmra.mrb[0].mxu0 %v478
          %v635 = vpop.f32.mrb[0].mxu0
          %v636 = vadd.f32 %v503, %v635
          %v637 = vpop.f32.mrb[0].mxu0
          %v638 = vpop.f32.mrb[0].mxu0
          %v639 = vadd.f32 %v503, %v638
          %v640 = vpop.f32.mrb[0].mxu0
          %641 = vmatprep.mubr.bf16.mxu0 0
          %642 = vmatmul.mubr.bf16.gmra.mrb[0].mxu0 %v479
          %v643 = vpop.f32.mrb[0].mxu0
          %v644 = vadd.f32 %v503, %v643
          %v645 = vpop.f32.mrb[0].mxu0
          %v646 = vpop.f32.mrb[0].mxu0
          %v647 = vadd.f32 %v503, %v646
          %v648 = vpop.f32.mrb[0].mxu0
          %649 = vdwg.mxu0
          %vm650 = vcmp.gt.f32.partialorder %v588, 0.0
          %vm651 = vcmp.gt.f32.partialorder %v591, 0.0
          %vm652 = vcmp.gt.f32.partialorder %v596, 0.0
          %vm653 = vcmp.gt.f32.partialorder %v599, 0.0
          %vm654 = vcmp.gt.f32.partialorder %v604, 0.0
          %vm655 = vcmp.gt.f32.partialorder %v607, 0.0
          %vm656 = vcmp.gt.f32.partialorder %v612, 0.0
          %vm657 = vcmp.gt.f32.partialorder %v615, 0.0
          %vm658 = vcmp.gt.f32.partialorder %v620, 0.0
          %vm659 = vcmp.gt.f32.partialorder %v623, 0.0
          %vm660 = vcmp.gt.f32.partialorder %v628, 0.0
          %vm661 = vcmp.gt.f32.partialorder %v631, 0.0
          %vm662 = vcmp.gt.f32.partialorder %v636, 0.0
          %vm663 = vcmp.gt.f32.partialorder %v639, 0.0
          %vm664 = vcmp.gt.f32.partialorder %v644, 0.0
          %vm665 = vcmp.gt.f32.partialorder %v647, 0.0
          %v666 = vstv %s480
          %v667 = vmul.f32 %v666, %v588
          %v668 = vmul.f32 %v666, %v591
          %v669 = vmul.f32 %v666, %v596
          %v670 = vmul.f32 %v666, %v599
          %v671 = vmul.f32 %v666, %v604
          %v672 = vmul.f32 %v666, %v607
          %v673 = vmul.f32 %v666, %v612
          %v674 = vmul.f32 %v666, %v615
          %v675 = vmul.f32 %v666, %v620
          %v676 = vmul.f32 %v666, %v623
          %v677 = vmul.f32 %v666, %v628
          %v678 = vmul.f32 %v666, %v631
          %v679 = vmul.f32 %v666, %v636
          %v680 = vmul.f32 %v666, %v639
          %v681 = vmul.f32 %v666, %v644
          %v682 = vmul.f32 %v666, %v647
          %v683 = vsel %vm650, %v588, %v667
          %v684 = vsel %vm651, %v591, %v668
          %v685 = vsel %vm652, %v596, %v669
          %v686 = vsel %vm653, %v599, %v670
          %v687 = vsel %vm654, %v604, %v671
          %v688 = vsel %vm655, %v607, %v672
          %v689 = vsel %vm656, %v612, %v673
          %v690 = vsel %vm657, %v615, %v674
          %v691 = vsel %vm658, %v620, %v675
          %v692 = vsel %vm659, %v623, %v676
          %v693 = vsel %vm660, %v628, %v677
          %v694 = vsel %vm661, %v631, %v678
          %v695 = vsel %vm662, %v636, %v679
          %v696 = vsel %vm663, %v639, %v680
          %v697 = vsel %vm664, %v644, %v681
          %v698 = vsel %vm665, %v647, %v682
          %v699 = vpack.c.bf16 %v684, %v683
          %v700 = vpack.c.bf16 %v686, %v685
          %v701 = vpack.c.bf16 %v688, %v687
          %v702 = vpack.c.bf16 %v690, %v689
          %v703 = vpack.c.bf16 %v692, %v691
          %v704 = vpack.c.bf16 %v694, %v693
          %v705 = vpack.c.bf16 %v696, %v695
          %v706 = vpack.c.bf16 %v698, %v697
          %v707 = vld [vmem:[#allocation10] sm:$0xff]
          %v708 = vld [vmem:[#allocation10 + $0x8] sm:$0xff]
          %v709 = vld [vmem:[#allocation10 + $0x10] sm:$0xff]
          %v710 = vld [vmem:[#allocation10 + $0x18] sm:$0xff]
          %v711 = vld [vmem:[#allocation10 + $0x20] sm:$0xff]
          %v712 = vld [vmem:[#allocation10 + $0x28] sm:$0xff]
          %v713 = vld [vmem:[#allocation10 + $0x30] sm:$0xff]
          %v714 = vld [vmem:[#allocation10 + $0x38] sm:$0xff]
          %v715 = vld [vmem:[#allocation10 + $0x40] sm:$0xff]
          %v716 = vld [vmem:[#allocation10 + $0x48] sm:$0xff]
          %v717 = vld [vmem:[#allocation10 + $0x50] sm:$0xff]
          %v718 = vld [vmem:[#allocation10 + $0x58] sm:$0xff]
          %v719 = vld [vmem:[#allocation10 + $0x60] sm:$0xff]
          %v720 = vld [vmem:[#allocation10 + $0x68] sm:$0xff]
          %v721 = vld [vmem:[#allocation10 + $0x70] sm:$0xff]
          %v722 = vld [vmem:[#allocation10 + $0x78] sm:$0xff]
          %v723 = vld [vmem:[%s5] sm:$0x3]
          %v725 = vlaneseq
          %v726 = vshrl.u32 %v725, 7
          %v727 = vsub.s32 0, %v726
          %v728 = vrot.slane %v723, %v727
          %v729 = vlaneseq
          %v730 = vshrl.u32 %v729, 7
          %v731 = vsub.s32 1, %v730
          %v732 = vrot.slane %v723, %v731
          %v751 = vunpack.c.l.b16 %v707
          %v752 = vunpack.c.h.b16 %v707
          %v753 = vunpack.c.l.b16 %v708
          %v754 = vunpack.c.h.b16 %v708
          %v755 = vunpack.c.l.b16 %v709
          %v756 = vunpack.c.h.b16 %v709
          %v757 = vunpack.c.l.b16 %v710
          %v758 = vunpack.c.h.b16 %v710
          %v759 = vunpack.c.l.b16 %v711
          %v760 = vunpack.c.h.b16 %v711
          %v761 = vunpack.c.l.b16 %v712
          %v762 = vunpack.c.h.b16 %v712
          %v763 = vunpack.c.l.b16 %v713
          %v764 = vunpack.c.h.b16 %v713
          %v765 = vunpack.c.l.b16 %v714
          %v766 = vunpack.c.h.b16 %v714
          %v767 = vunpack.c.l.b16 %v715
          %v768 = vunpack.c.h.b16 %v715
          %v769 = vunpack.c.l.b16 %v716
          %v770 = vunpack.c.h.b16 %v716
          %v771 = vunpack.c.l.b16 %v717
          %v772 = vunpack.c.h.b16 %v717
          %v773 = vunpack.c.l.b16 %v718
          %v774 = vunpack.c.h.b16 %v718
          %v775 = vunpack.c.l.b16 %v719
          %v776 = vunpack.c.h.b16 %v719
          %v777 = vunpack.c.l.b16 %v720
          %v778 = vunpack.c.h.b16 %v720
          %v779 = vunpack.c.l.b16 %v721
          %v780 = vunpack.c.h.b16 %v721
          %v781 = vunpack.c.l.b16 %v722
          %v782 = vunpack.c.h.b16 %v722
          %v783 = vpack.c.b16 %v753, %v751
          %v784 = vpack.c.b16 %v754, %v752
          %v785 = vpack.c.b16 %v757, %v755
          %v786 = vpack.c.b16 %v758, %v756
          %v787 = vpack.c.b16 %v761, %v759
          %v788 = vpack.c.b16 %v762, %v760
          %v789 = vpack.c.b16 %v765, %v763
          %v790 = vpack.c.b16 %v766, %v764
          %v791 = vpack.c.b16 %v769, %v767
          %v792 = vpack.c.b16 %v770, %v768
          %v793 = vpack.c.b16 %v773, %v771
          %v794 = vpack.c.b16 %v774, %v772
          %v795 = vpack.c.b16 %v777, %v775
          %v796 = vpack.c.b16 %v778, %v776
          %v797 = vpack.c.b16 %v781, %v779
          %v798 = vpack.c.b16 %v782, %v780
          %815 = vmatprep.subr.bf16.mxu0 %v784
          %816 = vmatpush1.bf16.msra.mxu0 %v783
          %817 = vmatprep.subr.bf16.mxu0 %v786
          %818 = vmatpush1.bf16.msra.mxu0 %v785
          %819 = vmatprep.subr.bf16.mxu0 %v788
          %820 = vmatpush1.bf16.msra.mxu0 %v787
          %821 = vmatprep.subr.bf16.mxu0 %v790
          %822 = vmatpush1.bf16.msra.mxu0 %v789
          %823 = vmatprep.subr.bf16.mxu0 %v792
          %824 = vmatpush1.bf16.msra.mxu0 %v791
          %825 = vmatprep.subr.bf16.mxu0 %v794
          %826 = vmatpush1.bf16.msra.mxu0 %v793
          %827 = vmatprep.subr.bf16.mxu0 %v796
          %828 = vmatpush1.bf16.msra.mxu0 %v795
          %829 = vmatprep.subr.bf16.mxu0 %v798
          %830 = vmatpush1.bf16.msra.mxu0 %v797
          %831 = vmatprep.subr.bf16.mxu0 0
          %832 = vmatpush1.bf16.msra.mxu0 0
          %833 = vmatprep.subr.bf16.mxu0 0
          %834 = vmatpush1.bf16.msra.mxu0 0
          %835 = vmatprep.subr.bf16.mxu0 0
          %836 = vmatpush1.bf16.msra.mxu0 0
          %837 = vmatprep.subr.bf16.mxu0 0
          %838 = vmatpush1.bf16.msra.mxu0 0
          %839 = vmatprep.subr.bf16.mxu0 0
          %840 = vmatpush1.bf16.msra.mxu0 0
          %841 = vmatprep.subr.bf16.mxu0 0
          %842 = vmatpush1.bf16.msra.mxu0 0
          %843 = vmatprep.subr.bf16.mxu0 0
          %844 = vmatpush1.bf16.msra.mxu0 0
          %845 = vmatprep.subr.bf16.mxu0 0
          %846 = vmatpush1.bf16.msra.mxu0 0
          %847 = vmatprep.mubr.bf16.mxu0 0
          %848 = vmatmul.mubr.bf16.gmra.mrb[0].mxu0 %v699
          %v849 = vpop.f32.mrb[0].mxu0
          %v850 = vadd.f32 %v728, %v849
          %v851 = vpop.f32.mrb[0].mxu0
          %v852 = vadd.f32 %v732, %v851
          %v853 = vpop.f32.mrb[0].mxu0
          %v854 = vadd.f32 %v728, %v853
          %v855 = vpop.f32.mrb[0].mxu0
          %v856 = vadd.f32 %v732, %v855
          %857 = vmatprep.mubr.bf16.mxu0 0
          %858 = vmatmul.mubr.bf16.gmra.mrb[0].mxu0 %v700
          %v859 = vpop.f32.mrb[0].mxu0
          %v860 = vadd.f32 %v728, %v859
          %v861 = vpop.f32.mrb[0].mxu0
          %v862 = vadd.f32 %v732, %v861
          %v863 = vpop.f32.mrb[0].mxu0
          %v864 = vadd.f32 %v728, %v863
          %v865 = vpop.f32.mrb[0].mxu0
          %v866 = vadd.f32 %v732, %v865
          %867 = vmatprep.mubr.bf16.mxu0 0
          %868 = vmatmul.mubr.bf16.gmra.mrb[0].mxu0 %v701
          %v869 = vpop.f32.mrb[0].mxu0
          %v870 = vadd.f32 %v728, %v869
          %v871 = vpop.f32.mrb[0].mxu0
          %v872 = vadd.f32 %v732, %v871
          %v873 = vpop.f32.mrb[0].mxu0
          %v874 = vadd.f32 %v728, %v873
          %v875 = vpop.f32.mrb[0].mxu0
          %v876 = vadd.f32 %v732, %v875
          %877 = vmatprep.mubr.bf16.mxu0 0
          %878 = vmatmul.mubr.bf16.gmra.mrb[0].mxu0 %v702
          %v879 = vpop.f32.mrb[0].mxu0
          %v880 = vadd.f32 %v728, %v879
          %v881 = vpop.f32.mrb[0].mxu0
          %v882 = vadd.f32 %v732, %v881
          %v883 = vpop.f32.mrb[0].mxu0
          %v884 = vadd.f32 %v728, %v883
          %v885 = vpop.f32.mrb[0].mxu0
          %v886 = vadd.f32 %v732, %v885
          %887 = vmatprep.mubr.bf16.mxu0 0
          %888 = vmatmul.mubr.bf16.gmra.mrb[0].mxu0 %v703
          %v889 = vpop.f32.mrb[0].mxu0
          %v890 = vadd.f32 %v728, %v889
          %v891 = vpop.f32.mrb[0].mxu0
          %v892 = vadd.f32 %v732, %v891
          %v893 = vpop.f32.mrb[0].mxu0
          %v894 = vadd.f32 %v728, %v893
          %v895 = vpop.f32.mrb[0].mxu0
          %v896 = vadd.f32 %v732, %v895
          %897 = vmatprep.mubr.bf16.mxu0 0
          %898 = vmatmul.mubr.bf16.gmra.mrb[0].mxu0 %v704
          %v899 = vpop.f32.mrb[0].mxu0
          %v900 = vadd.f32 %v728, %v899
          %v901 = vpop.f32.mrb[0].mxu0
          %v902 = vadd.f32 %v732, %v901
          %v903 = vpop.f32.mrb[0].mxu0
          %v904 = vadd.f32 %v728, %v903
          %v905 = vpop.f32.mrb[0].mxu0
          %v906 = vadd.f32 %v732, %v905
          %907 = vmatprep.mubr.bf16.mxu0 0
          %908 = vmatmul.mubr.bf16.gmra.mrb[0].mxu0 %v705
          %v909 = vpop.f32.mrb[0].mxu0
          %v910 = vadd.f32 %v728, %v909
          %v911 = vpop.f32.mrb[0].mxu0
          %v912 = vadd.f32 %v732, %v911
          %v913 = vpop.f32.mrb[0].mxu0
          %v914 = vadd.f32 %v728, %v913
          %v915 = vpop.f32.mrb[0].mxu0
          %v916 = vadd.f32 %v732, %v915
          %917 = vmatprep.mubr.bf16.mxu0 0
          %918 = vmatmul.mubr.bf16.gmra.mrb[0].mxu0 %v706
          %v919 = vpop.f32.mrb[0].mxu0
          %v920 = vadd.f32 %v728, %v919
          %v921 = vpop.f32.mrb[0].mxu0
          %v922 = vadd.f32 %v732, %v921
          %v923 = vpop.f32.mrb[0].mxu0
          %v924 = vadd.f32 %v728, %v923
          %v925 = vpop.f32.mrb[0].mxu0
          %v926 = vadd.f32 %v732, %v925
          %927 = vdwg.mxu0
          %vm928 = vcmp.gt.f32.partialorder %v850, 0.0
          %vm929 = vcmp.gt.f32.partialorder %v852, 0.0
          %vm930 = vcmp.gt.f32.partialorder %v854, 0.0
          %vm931 = vcmp.gt.f32.partialorder %v856, 0.0
          %vm932 = vcmp.gt.f32.partialorder %v860, 0.0
          %vm933 = vcmp.gt.f32.partialorder %v862, 0.0
          %vm934 = vcmp.gt.f32.partialorder %v864, 0.0
          %vm935 = vcmp.gt.f32.partialorder %v866, 0.0
          %vm936 = vcmp.gt.f32.partialorder %v870, 0.0
          %vm937 = vcmp.gt.f32.partialorder %v872, 0.0
          %vm938 = vcmp.gt.f32.partialorder %v874, 0.0
          %vm939 = vcmp.gt.f32.partialorder %v876, 0.0
          %vm940 = vcmp.gt.f32.partialorder %v880, 0.0
          %vm941 = vcmp.gt.f32.partialorder %v882, 0.0
          %vm942 = vcmp.gt.f32.partialorder %v884, 0.0
          %vm943 = vcmp.gt.f32.partialorder %v886, 0.0
          %vm944 = vcmp.gt.f32.partialorder %v890, 0.0
          %vm945 = vcmp.gt.f32.partialorder %v892, 0.0
          %vm946 = vcmp.gt.f32.partialorder %v894, 0.0
          %vm947 = vcmp.gt.f32.partialorder %v896, 0.0
          %vm948 = vcmp.gt.f32.partialorder %v900, 0.0
          %vm949 = vcmp.gt.f32.partialorder %v902, 0.0
          %vm950 = vcmp.gt.f32.partialorder %v904, 0.0
          %vm951 = vcmp.gt.f32.partialorder %v906, 0.0
          %vm952 = vcmp.gt.f32.partialorder %v910, 0.0
          %vm953 = vcmp.gt.f32.partialorder %v912, 0.0
          %vm954 = vcmp.gt.f32.partialorder %v914, 0.0
          %vm955 = vcmp.gt.f32.partialorder %v916, 0.0
          %vm956 = vcmp.gt.f32.partialorder %v920, 0.0
          %vm957 = vcmp.gt.f32.partialorder %v922, 0.0
          %vm958 = vcmp.gt.f32.partialorder %v924, 0.0
          %vm959 = vcmp.gt.f32.partialorder %v926, 0.0
          %v960 = vstv %s481
          %v961 = vmul.f32 %v960, %v850
          %v962 = vmul.f32 %v960, %v852
          %v963 = vmul.f32 %v960, %v854
          %v964 = vmul.f32 %v960, %v856
          %v965 = vmul.f32 %v960, %v860
          %v966 = vmul.f32 %v960, %v862
          %v967 = vmul.f32 %v960, %v864
          %v968 = vmul.f32 %v960, %v866
          %v969 = vmul.f32 %v960, %v870
          %v970 = vmul.f32 %v960, %v872
          %v971 = vmul.f32 %v960, %v874
          %v972 = vmul.f32 %v960, %v876
          %v973 = vmul.f32 %v960, %v880
          %v974 = vmul.f32 %v960, %v882
          %v975 = vmul.f32 %v960, %v884
          %v976 = vmul.f32 %v960, %v886
          %v977 = vmul.f32 %v960, %v890
          %v978 = vmul.f32 %v960, %v892
          %v979 = vmul.f32 %v960, %v894
          %v980 = vmul.f32 %v960, %v896
          %v981 = vmul.f32 %v960, %v900
          %v982 = vmul.f32 %v960, %v902
          %v983 = vmul.f32 %v960, %v904
          %v984 = vmul.f32 %v960, %v906
          %v985 = vmul.f32 %v960, %v910
          %v986 = vmul.f32 %v960, %v912
          %v987 = vmul.f32 %v960, %v914
          %v988 = vmul.f32 %v960, %v916
          %v989 = vmul.f32 %v960, %v920
          %v990 = vmul.f32 %v960, %v922
          %v991 = vmul.f32 %v960, %v924
          %v992 = vmul.f32 %v960, %v926
          %v993 = vsel %vm928, %v850, %v961
          %v994 = vsel %vm929, %v852, %v962
          %v995 = vsel %vm930, %v854, %v963
          %v996 = vsel %vm931, %v856, %v964
          %v997 = vsel %vm932, %v860, %v965
          %v998 = vsel %vm933, %v862, %v966
          %v999 = vsel %vm934, %v864, %v967
          %v1000 = vsel %vm935, %v866, %v968
          %v1001 = vsel %vm936, %v870, %v969
          %v1002 = vsel %vm937, %v872, %v970
          %v1003 = vsel %vm938, %v874, %v971
          %v1004 = vsel %vm939, %v876, %v972
          %v1005 = vsel %vm940, %v880, %v973
          %v1006 = vsel %vm941, %v882, %v974
          %v1007 = vsel %vm942, %v884, %v975
          %v1008 = vsel %vm943, %v886, %v976
          %v1009 = vsel %vm944, %v890, %v977
          %v1010 = vsel %vm945, %v892, %v978
          %v1011 = vsel %vm946, %v894, %v979
          %v1012 = vsel %vm947, %v896, %v980
          %v1013 = vsel %vm948, %v900, %v981
          %v1014 = vsel %vm949, %v902, %v982
          %v1015 = vsel %vm950, %v904, %v983
          %v1016 = vsel %vm951, %v906, %v984
          %v1017 = vsel %vm952, %v910, %v985
          %v1018 = vsel %vm953, %v912, %v986
          %v1019 = vsel %vm954, %v914, %v987
          %v1020 = vsel %vm955, %v916, %v988
          %v1021 = vsel %vm956, %v920, %v989
          %v1022 = vsel %vm957, %v922, %v990
          %v1023 = vsel %vm958, %v924, %v991
          %v1024 = vsel %vm959, %v926, %v992
          %v1025 = vpack.c.bf16 %v995, %v993
          %v1026 = vpack.c.bf16 %v996, %v994
          %v1027 = vpack.c.bf16 %v999, %v997
          %v1028 = vpack.c.bf16 %v1000, %v998
          %v1029 = vpack.c.bf16 %v1003, %v1001
          %v1030 = vpack.c.bf16 %v1004, %v1002
          %v1031 = vpack.c.bf16 %v1007, %v1005
          %v1032 = vpack.c.bf16 %v1008, %v1006
          %v1033 = vpack.c.bf16 %v1011, %v1009
          %v1034 = vpack.c.bf16 %v1012, %v1010
          %v1035 = vpack.c.bf16 %v1015, %v1013
          %v1036 = vpack.c.bf16 %v1016, %v1014
          %v1037 = vpack.c.bf16 %v1019, %v1017
          %v1038 = vpack.c.bf16 %v1020, %v1018
          %v1039 = vpack.c.bf16 %v1023, %v1021
          %v1040 = vpack.c.bf16 %v1024, %v1022
          %1041 = vst [vmem:[#allocation2] sm:$0xff] %v1025
          %1042 = vst [vmem:[#allocation2 + $0x8] sm:$0xff] %v1026
          %1043 = vst [vmem:[#allocation2 + $0x10] sm:$0xff] %v1027
          %1044 = vst [vmem:[#allocation2 + $0x18] sm:$0xff] %v1028
          %1045 = vst [vmem:[#allocation2 + $0x20] sm:$0xff] %v1029
          %1046 = vst [vmem:[#allocation2 + $0x28] sm:$0xff] %v1030
          %1047 = vst [vmem:[#allocation2 + $0x30] sm:$0xff] %v1031
          %1048 = vst [vmem:[#allocation2 + $0x38] sm:$0xff] %v1032
          %1049 = vst [vmem:[#allocation2 + $0x40] sm:$0xff] %v1033
          %1050 = vst [vmem:[#allocation2 + $0x48] sm:$0xff] %v1034
          %1051 = vst [vmem:[#allocation2 + $0x50] sm:$0xff] %v1035
          %1052 = vst [vmem:[#allocation2 + $0x58] sm:$0xff] %v1036
          %1053 = vst [vmem:[#allocation2 + $0x60] sm:$0xff] %v1037
          %1054 = vst [vmem:[#allocation2 + $0x68] sm:$0xff] %v1038
          %1055 = vst [vmem:[#allocation2 + $0x70] sm:$0xff] %v1039
          %1056 = vst [vmem:[#allocation2 + $0x78] sm:$0xff] %v1040
        $region76: #{tpu_custom_call.1} parent=55 // pred_fallthru
          _
        %v1057 = vld [vmem:[#allocation2] sm:$0xff]
        %v1058 = vld [vmem:[#allocation2 + $0x8] sm:$0xff]
        %v1059 = vld [vmem:[#allocation2 + $0x10] sm:$0xff]
        %v1060 = vld [vmem:[#allocation2 + $0x18] sm:$0xff]
        %v1061 = vld [vmem:[#allocation2 + $0x20] sm:$0xff]
        %v1062 = vld [vmem:[#allocation2 + $0x28] sm:$0xff]
        %v1063 = vld [vmem:[#allocation2 + $0x30] sm:$0xff]
        %v1064 = vld [vmem:[#allocation2 + $0x38] sm:$0xff]
        %v1065 = vld [vmem:[#allocation2 + $0x40] sm:$0xff]
        %v1066 = vld [vmem:[#allocation2 + $0x48] sm:$0xff]
        %v1067 = vld [vmem:[#allocation2 + $0x50] sm:$0xff]
        %v1068 = vld [vmem:[#allocation2 + $0x58] sm:$0xff]
        %v1069 = vld [vmem:[#allocation2 + $0x60] sm:$0xff]
        %v1070 = vld [vmem:[#allocation2 + $0x68] sm:$0xff]
        %v1071 = vld [vmem:[#allocation2 + $0x70] sm:$0xff]
        %v1072 = vld [vmem:[#allocation2 + $0x78] sm:$0xff]
        %v1073 = vld [vmem:[%s403] sm:$0xf]
        %v1074 = vld [vmem:[%s403 + $0x4] sm:$0xf]
        %v1075 = vld [vmem:[%s403 + $0x8] sm:$0xf]
        %v1076 = vld [vmem:[%s403 + $0xc] sm:$0xf]
        %v1077 = vld [vmem:[%s403 + $0x10] sm:$0xf]
        %v1078 = vld [vmem:[%s403 + $0x14] sm:$0xf]
        %v1079 = vld [vmem:[%s403 + $0x18] sm:$0xf]
        %v1080 = vld [vmem:[%s403 + $0x1c] sm:$0xf]
        %v1081 = vld [vmem:[%s403 + $0x20] sm:$0xf]
        %v1082 = vld [vmem:[%s403 + $0x24] sm:$0xf]
        %v1083 = vld [vmem:[%s403 + $0x28] sm:$0xf]
        %v1084 = vld [vmem:[%s403 + $0x2c] sm:$0xf]
        %v1085 = vld [vmem:[%s403 + $0x30] sm:$0xf]
        %v1086 = vld [vmem:[%s403 + $0x34] sm:$0xf]
        %v1087 = vld [vmem:[%s403 + $0x38] sm:$0xf]
        %v1088 = vld [vmem:[%s403 + $0x3c] sm:$0xf]
        %v1089 = vld [vmem:[%s403 + $0x40] sm:$0xf]
        %v1090 = vld [vmem:[%s403 + $0x44] sm:$0xf]
        %v1091 = vld [vmem:[%s403 + $0x48] sm:$0xf]
        %v1092 = vld [vmem:[%s403 + $0x4c] sm:$0xf]
        %v1093 = vld [vmem:[%s403 + $0x50] sm:$0xf]
        %v1094 = vld [vmem:[%s403 + $0x54] sm:$0xf]
        %v1095 = vld [vmem:[%s403 + $0x58] sm:$0xf]
        %v1096 = vld [vmem:[%s403 + $0x5c] sm:$0xf]
        %v1097 = vld [vmem:[%s403 + $0x60] sm:$0xf]
        %v1098 = vld [vmem:[%s403 + $0x64] sm:$0xf]
        %v1099 = vld [vmem:[%s403 + $0x68] sm:$0xf]
        %v1100 = vld [vmem:[%s403 + $0x6c] sm:$0xf]
        %v1101 = vld [vmem:[%s403 + $0x70] sm:$0xf]
        %v1102 = vld [vmem:[%s403 + $0x74] sm:$0xf]
        %v1103 = vld [vmem:[%s403 + $0x78] sm:$0xf]
        %v1104 = vld [vmem:[%s403 + $0x7c] sm:$0xf]
        %v1105 = vld [vmem:[%s449] sm:$0x1]
        %v1107 = vlaneseq
        %v1108 = vshrl.u32 %v1107, 7
        %v1109 = vsub.s32 0, %v1108
        %v1110 = vrot.slane %v1105, %v1109
        %v1144 = vunpack.c.l.b16 %v1073
        %v1145 = vunpack.c.l.b16 %v1074
        %v1146 = vunpack.c.l.b16 %v1075
        %v1147 = vunpack.c.l.b16 %v1076
        %v1148 = vunpack.c.l.b16 %v1077
        %v1149 = vunpack.c.l.b16 %v1078
        %v1150 = vunpack.c.l.b16 %v1079
        %v1151 = vunpack.c.l.b16 %v1080
        %v1152 = vunpack.c.l.b16 %v1081
        %v1153 = vunpack.c.l.b16 %v1082
        %v1154 = vunpack.c.l.b16 %v1083
        %v1155 = vunpack.c.l.b16 %v1084
        %v1156 = vunpack.c.l.b16 %v1085
        %v1157 = vunpack.c.l.b16 %v1086
        %v1158 = vunpack.c.l.b16 %v1087
        %v1159 = vunpack.c.l.b16 %v1088
        %v1160 = vunpack.c.l.b16 %v1089
        %v1161 = vunpack.c.l.b16 %v1090
        %v1162 = vunpack.c.l.b16 %v1091
        %v1163 = vunpack.c.l.b16 %v1092
        %v1164 = vunpack.c.l.b16 %v1093
        %v1165 = vunpack.c.l.b16 %v1094
        %v1166 = vunpack.c.l.b16 %v1095
        %v1167 = vunpack.c.l.b16 %v1096
        %v1168 = vunpack.c.l.b16 %v1097
        %v1169 = vunpack.c.l.b16 %v1098
        %v1170 = vunpack.c.l.b16 %v1099
        %v1171 = vunpack.c.l.b16 %v1100
        %v1172 = vunpack.c.l.b16 %v1101
        %v1173 = vunpack.c.l.b16 %v1102
        %v1174 = vunpack.c.l.b16 %v1103
        %v1175 = vunpack.c.l.b16 %v1104
        %v1176 = vpack.c.b16 %v1145, %v1144
        %v1177 = vpack.c.b16 %v1147, %v1146
        %v1178 = vpack.c.b16 %v1149, %v1148
        %v1179 = vpack.c.b16 %v1151, %v1150
        %v1180 = vpack.c.b16 %v1153, %v1152
        %v1181 = vpack.c.b16 %v1155, %v1154
        %v1182 = vpack.c.b16 %v1157, %v1156
        %v1183 = vpack.c.b16 %v1159, %v1158
        %v1184 = vpack.c.b16 %v1161, %v1160
        %v1185 = vpack.c.b16 %v1163, %v1162
        %v1186 = vpack.c.b16 %v1165, %v1164
        %v1187 = vpack.c.b16 %v1167, %v1166
        %v1188 = vpack.c.b16 %v1169, %v1168
        %v1189 = vpack.c.b16 %v1171, %v1170
        %v1190 = vpack.c.b16 %v1173, %v1172
        %v1191 = vpack.c.b16 %v1175, %v1174
        %1208 = vmatprep.subr.bf16.mxu0 0
        %1209 = vmatpush1.bf16.msra.mxu0 %v1176
        %1210 = vmatprep.subr.bf16.mxu0 0
        %1211 = vmatpush1.bf16.msra.mxu0 %v1177
        %1212 = vmatprep.subr.bf16.mxu0 0
        %1213 = vmatpush1.bf16.msra.mxu0 %v1178
        %1214 = vmatprep.subr.bf16.mxu0 0
        %1215 = vmatpush1.bf16.msra.mxu0 %v1179
        %1216 = vmatprep.subr.bf16.mxu0 0
        %1217 = vmatpush1.bf16.msra.mxu0 %v1180
        %1218 = vmatprep.subr.bf16.mxu0 0
        %1219 = vmatpush1.bf16.msra.mxu0 %v1181
        %1220 = vmatprep.subr.bf16.mxu0 0
        %1221 = vmatpush1.bf16.msra.mxu0 %v1182
        %1222 = vmatprep.subr.bf16.mxu0 0
        %1223 = vmatpush1.bf16.msra.mxu0 %v1183
        %1224 = vmatprep.subr.bf16.mxu0 0
        %1225 = vmatpush1.bf16.msra.mxu0 %v1184
        %1226 = vmatprep.subr.bf16.mxu0 0
        %1227 = vmatpush1.bf16.msra.mxu0 %v1185
        %1228 = vmatprep.subr.bf16.mxu0 0
        %1229 = vmatpush1.bf16.msra.mxu0 %v1186
        %1230 = vmatprep.subr.bf16.mxu0 0
        %1231 = vmatpush1.bf16.msra.mxu0 %v1187
        %1232 = vmatprep.subr.bf16.mxu0 0
        %1233 = vmatpush1.bf16.msra.mxu0 %v1188
        %1234 = vmatprep.subr.bf16.mxu0 0
        %1235 = vmatpush1.bf16.msra.mxu0 %v1189
        %1236 = vmatprep.subr.bf16.mxu0 0
        %1237 = vmatpush1.bf16.msra.mxu0 %v1190
        %1238 = vmatprep.subr.bf16.mxu0 0
        %1239 = vmatpush1.bf16.msra.mxu0 %v1191
        %1240 = vmatprep.mubr.bf16.mxu0 %v1058
        %1241 = vmatmul.mubr.bf16.gmra.mrb[0].mxu0 %v1057
        %v1242 = vpop.f32.mrb[0].mxu0
        %v1243 = vadd.f32 %v1110, %v1242
        %v1244 = vpop.f32.mrb[0].mxu0
        %v1245 = vpop.f32.mrb[0].mxu0
        %v1246 = vadd.f32 %v1110, %v1245
        %v1247 = vpop.f32.mrb[0].mxu0
        %1248 = vmatprep.mubr.bf16.mxu0 %v1060
        %1249 = vmatmul.mubr.bf16.gmra.mrb[0].mxu0 %v1059
        %v1250 = vpop.f32.mrb[0].mxu0
        %v1251 = vadd.f32 %v1110, %v1250
        %v1252 = vpop.f32.mrb[0].mxu0
        %v1253 = vpop.f32.mrb[0].mxu0
        %v1254 = vadd.f32 %v1110, %v1253
        %v1255 = vpop.f32.mrb[0].mxu0
        %1256 = vmatprep.mubr.bf16.mxu0 %v1062
        %1257 = vmatmul.mubr.bf16.gmra.mrb[0].mxu0 %v1061
        %v1258 = vpop.f32.mrb[0].mxu0
        %v1259 = vadd.f32 %v1110, %v1258
        %v1260 = vpop.f32.mrb[0].mxu0
        %v1261 = vpop.f32.mrb[0].mxu0
        %v1262 = vadd.f32 %v1110, %v1261
        %v1263 = vpop.f32.mrb[0].mxu0
        %1264 = vmatprep.mubr.bf16.mxu0 %v1064
        %1265 = vmatmul.mubr.bf16.gmra.mrb[0].mxu0 %v1063
        %v1266 = vpop.f32.mrb[0].mxu0
        %v1267 = vadd.f32 %v1110, %v1266
        %v1268 = vpop.f32.mrb[0].mxu0
        %v1269 = vpop.f32.mrb[0].mxu0
        %v1270 = vadd.f32 %v1110, %v1269
        %v1271 = vpop.f32.mrb[0].mxu0
        %1272 = vmatprep.mubr.bf16.mxu0 %v1066
        %1273 = vmatmul.mubr.bf16.gmra.mrb[0].mxu0 %v1065
        %v1274 = vpop.f32.mrb[0].mxu0
        %v1275 = vadd.f32 %v1110, %v1274
        %v1276 = vpop.f32.mrb[0].mxu0
        %v1277 = vpop.f32.mrb[0].mxu0
        %v1278 = vadd.f32 %v1110, %v1277
        %v1279 = vpop.f32.mrb[0].mxu0
        %1280 = vmatprep.mubr.bf16.mxu0 %v1068
        %1281 = vmatmul.mubr.bf16.gmra.mrb[0].mxu0 %v1067
        %v1282 = vpop.f32.mrb[0].mxu0
        %v1283 = vadd.f32 %v1110, %v1282
        %v1284 = vpop.f32.mrb[0].mxu0
        %v1285 = vpop.f32.mrb[0].mxu0
        %v1286 = vadd.f32 %v1110, %v1285
        %v1287 = vpop.f32.mrb[0].mxu0
        %1288 = vmatprep.mubr.bf16.mxu0 %v1070
        %1289 = vmatmul.mubr.bf16.gmra.mrb[0].mxu0 %v1069
        %v1290 = vpop.f32.mrb[0].mxu0
        %v1291 = vadd.f32 %v1110, %v1290
        %v1292 = vpop.f32.mrb[0].mxu0
        %v1293 = vpop.f32.mrb[0].mxu0
        %v1294 = vadd.f32 %v1110, %v1293
        %v1295 = vpop.f32.mrb[0].mxu0
        %1296 = vmatprep.mubr.bf16.mxu0 %v1072
        %1297 = vmatmul.mubr.bf16.gmra.mrb[0].mxu0 %v1071
        %v1298 = vpop.f32.mrb[0].mxu0
        %v1299 = vadd.f32 %v1110, %v1298
        %v1300 = vpop.f32.mrb[0].mxu0
        %v1301 = vpop.f32.mrb[0].mxu0
        %v1302 = vadd.f32 %v1110, %v1301
        %v1303 = vpop.f32.mrb[0].mxu0
        %1304 = vdwg.mxu0
        %v1305 = vtanh.pop %v1243
        %v1306 = vtanh.pop %v1246
        %v1307 = vtanh.pop %v1251
        %v1308 = vtanh.pop %v1254
        %v1309 = vtanh.pop %v1259
        %v1310 = vtanh.pop %v1262
        %v1311 = vtanh.pop %v1267
        %v1312 = vtanh.pop %v1270
        %v1313 = vtanh.pop %v1275
        %v1314 = vtanh.pop %v1278
        %v1315 = vtanh.pop %v1283
        %v1316 = vtanh.pop %v1286
        %v1317 = vtanh.pop %v1291
        %v1318 = vtanh.pop %v1294
        %v1319 = vtanh.pop %v1299
        %v1320 = vtanh.pop %v1302
        %1321 = vst [vmem:[%s445] sm:$0xff] %v1305
        %1322 = vst [vmem:[%s445 + $0x8] sm:$0xff] %v1306
        %1323 = vst [vmem:[%s445 + $0x10] sm:$0xff] %v1307
        %1324 = vst [vmem:[%s445 + $0x18] sm:$0xff] %v1308
        %1325 = vst [vmem:[%s445 + $0x20] sm:$0xff] %v1309
        %1326 = vst [vmem:[%s445 + $0x28] sm:$0xff] %v1310
        %1327 = vst [vmem:[%s445 + $0x30] sm:$0xff] %v1311
        %1328 = vst [vmem:[%s445 + $0x38] sm:$0xff] %v1312
        %1329 = vst [vmem:[%s445 + $0x40] sm:$0xff] %v1313
        %1330 = vst [vmem:[%s445 + $0x48] sm:$0xff] %v1314
        %1331 = vst [vmem:[%s445 + $0x50] sm:$0xff] %v1315
        %1332 = vst [vmem:[%s445 + $0x58] sm:$0xff] %v1316
        %1333 = vst [vmem:[%s445 + $0x60] sm:$0xff] %v1317
        %1334 = vst [vmem:[%s445 + $0x68] sm:$0xff] %v1318
        %1335 = vst [vmem:[%s445 + $0x70] sm:$0xff] %v1319
        %1336 = vst [vmem:[%s445 + $0x78] sm:$0xff] %v1320
        %s1337 = sand.u32 %s258, 1
        %s1338 = scalar_lea.sflag [#allocation7], %s1337
        %s1339 = sand.u32 %s258, 1
        %s1340 = smul.addr %s1339, 128
        %s1341 = scalar_lea.vmem [#allocation13], %s1340
        // Predicated region
        $region77: #{tpu_custom_call.1} parent=55 // pred_check
          %p1342 = pneg %p268
        $region78: #{tpu_custom_call.1} parent=55 // pred_check_branch
          %1344 = sbr.rel (%p1342) target = $region80
        $region79: #{tpu_custom_call.1} parent=55 // pred_region
          %s1345 = smul.u32 16, %s36
          %s1347 = ssub.s32 2048, 2048
          %1348 = vsyncadd %s1338, %s1347
          %s1349 = smul.addr %s1345, 3
          %s1350 = sadd.s32 %s37, %s1349
          %s1351 = smul.addr %s1350, 128
          %s1352 = scalar_lea.hbm %s9, %s1351
          %s1353 = sshll.u32 %s1341, 4
          %s1354 = int_to_ptr.vmem [resolvable:$true] %s1353
          %1359 = dma.vmem_to_hbm [thread:$0]  %s1354, 2048, %s1352, %s1338, 128, 384, 8
        $region80: #{tpu_custom_call.1} parent=55 // pred_fallthru
          _
      $region56: #{tpu_custom_call.1} parent=5 // pred_fallthru
        _
      %p1360 = scmp.le.s32.totalorder 2, %s27
      // Predicated region
      $region81: #{tpu_custom_call.1} parent=5 // pred_check
        %p1361 = pneg %p1360
      $region82: #{tpu_custom_call.1} parent=5 // pred_check_branch
        %1363 = sbr.rel (%p1361) target = $region84
      $region83: #{tpu_custom_call.1} parent=5 // pred_region
        %s1364 = ssub.s32 %s27, 2
        // Predicated region
        $region85: #{tpu_custom_call.1} parent=83 // pred_check
          %p1365 = pneg %p274
        $region86: #{tpu_custom_call.1} parent=83 // pred_check_branch
          %1367 = sbr.rel (%p1365) target = $region88
        $region87: #{tpu_custom_call.1} parent=83 // pred_region
          %s1368 = sand.u32 %s259, 1
          %s1369 = scalar_lea.sflag [#allocation7], %s1368
          %s1370 = sand.u32 %s259, 1
          %s1371 = smul.addr %s1370, 128
          %s1372 = scalar_lea.vmem [#allocation13], %s1371
          %1373 = dma.done %s1369, 2048
        $region88: #{tpu_custom_call.1} parent=83 // pred_fallthru
          _
      $region84: #{tpu_custom_call.1} parent=5 // pred_fallthru
        _
    $region6: #{tpu_custom_call.1} parent=1 // loop_footer
      %s31 = sadd.s32 1, %s27
    $region7: #{tpu_custom_call.1} parent=1 // loop_footer_branch
      %26 = sbr.rel target = $region3
    $region8: #{tpu_custom_call.1} parent=1 // loop_exit
      _
    %1374 = vsyncpa [#allocation6], 1
    %s1375 = scalar_lea.sflag [#allocation6], 1
    %1376 = vsyncpa %s1375, 1
    %1377 = vsyncpa [#allocation9], 1
    %1378 = vsyncpa [#allocation12], 1
    %s1379 = scalar_lea.sflag [#allocation12], 1
    %1380 = vsyncpa %s1379, 1
    %1381 = vsyncpa [#allocation7], 1
    %s1382 = scalar_lea.sflag [#allocation7], 1
    %1383 = vsyncpa %s1382, 1

</llo_original>
